<compile_context>
chip_gen: v7x
topology: tpu7x:2x2x1
jax: 0.10.0
libtpu: 0.0.40
codegen_flags: <defaults>
</compile_context>

<pallas_src>
import jax
import jax.numpy as jnp
from jax import lax
from jax.experimental import pallas as pl
from jax.experimental.pallas import tpu as pltpu

INPUT_SIZE = 1
HIDDEN1 = 20
HIDDEN2 = 10
OUTPUT_SIZE = 1

_HIGHEST = jax.lax.Precision.HIGHEST


def _round_up(n, m):
    return ((n + m - 1) // m) * m


def _make_kernel(chunk, n_full, rem):
    """Build the kernel with static inner-loop chunking (chunk, n_full, rem)."""

    def kernel(x_ref, w1a_ref, w2_ref, b2_ref, w3_ref, b3_ref, o_ref):
        # Hoisted weight loads: resident VMEM blocks, read once per grid step.
        w1a = w1a_ref[...]          # (HIDDEN1, 2)       [w1 | b1]
        w2 = w2_ref[...]            # (HIDDEN2, HIDDEN1)
        b2 = b2_ref[...]            # (HIDDEN2, 1)
        w3 = w3_ref[...]            # (1, HIDDEN2)
        b3 = b3_ref[...]            # (1, 1)

        def make_chunk_fn(size):
            # Hoist constants and their lane-broadcasts out of the inner loop
            # (JAX does not CSE broadcast_in_dim).
            ones = jnp.ones((1, size), jnp.float32)
            b2b = jnp.broadcast_to(b2, (HIDDEN2, size))
            b3b = jnp.broadcast_to(b3, (OUTPUT_SIZE, size))

            def run(off):
                x = x_ref[:, pl.ds(off, size)]                      # (1, size)
                xa = jnp.concatenate([x, ones], axis=0)             # (2, size)
                # Layer 1 (bias folded): K=2 matmul on the MXU.
                h1 = jnp.dot(w1a, xa, precision=_HIGHEST,
                             preferred_element_type=jnp.float32)    # (20, size)
                h1 = jnp.maximum(h1, 0.0)
                # Layer 2: (10,20) @ (20,size) on the MXU.
                h2 = jnp.dot(w2, h1, precision=_HIGHEST,
                             preferred_element_type=jnp.float32)    # (10, size)
                h2 = jnp.maximum(h2 + b2b, 0.0)
                # Layer 3: (1,10) @ (10,size) on the MXU.
                out = jnp.dot(w3, h2, precision=_HIGHEST,
                              preferred_element_type=jnp.float32) + b3b
                o_ref[:, pl.ds(off, size)] = out.astype(o_ref.dtype)

            return run

        main = make_chunk_fn(chunk)

        def body(c, carry):
            main(pl.multiple_of(c * chunk, 128))
            return carry

        lax.fori_loop(0, n_full, body, 0)

        if rem:   # static tail chunk (rem is a multiple of 128)
            make_chunk_fn(rem)(n_full * chunk)

    return kernel


def polynomial_regression_forward(x, params, *, block_b=256 * 1024, chunk=4096):
    """x: (B, INPUT_SIZE) float32. Returns (B, OUTPUT_SIZE) float32."""
    w1, b1, w2, b2, w3, b3 = (params["w1"], params["b1"], params["w2"],
                              params["b2"], params["w3"], params["b3"])
    B = x.shape[0]

    # Batch on the lane axis: (B,1) -> (1,B) is a free (contiguous) reshape.
    xt = x.reshape(INPUT_SIZE, B)

    # Fold b1 into an augmented (HIDDEN1, 2) weight so layer 1 is a K=2 matmul.
    w1a = jnp.concatenate([w1, b1], axis=1)

    # Batch tile: big (amortize ~0.35us/step overhead), multiple of 128 lanes,
    # capped so (a) large B gives >=2 grid steps (v7x has 2 TCs) and (b) the
    # four double-buffered, 8-sublane-padded (1,tb) IO blocks stay <= ~48 MiB.
    tb = min(_round_up(block_b, 128),
             _round_up(pl.cdiv(B, 2), 128),
             (48 << 20) // 128)
    tb = max(tb, 128)

    # Inner lane-chunk loop keeps intermediates small independent of tb.
    chunk_eff = max(128, min(_round_up(chunk, 128), tb))
    n_full = tb // chunk_eff
    rem = tb - n_full * chunk_eff          # multiple of 128, possibly 0

    grid = pl.cdiv(B, tb)                  # ragged last block, no host pad/slice

    # VMEM budget: (1, tb) f32 blocks pad to 8 sublanes; 2 arrays x 2 buffers.
    io_bytes = 2 * 2 * 8 * tb * 4
    vmem_limit = int(min(max(io_bytes + (8 << 20), 32 << 20), 96 << 20))

    def const(a):
        return pl.BlockSpec(a.shape, lambda i: (0, 0))   # resident across steps

    out = pl.pallas_call(
        _make_kernel(chunk_eff, n_full, rem),
        out_shape=jax.ShapeDtypeStruct((OUTPUT_SIZE, B), jnp.float32),
        grid=(grid,),
        in_specs=[
            pl.BlockSpec((INPUT_SIZE, tb), lambda i: (0, i)),
            const(w1a), const(w2), const(b2), const(w3), const(b3),
        ],
        out_specs=pl.BlockSpec((OUTPUT_SIZE, tb), lambda i: (0, i)),
        compiler_params=pltpu.CompilerParams(
            dimension_semantics=("parallel",),
            vmem_limit_bytes=vmem_limit),
    )(xt, w1a, w2, b2, w3, b3)

    return out.reshape(B, OUTPUT_SIZE)     # (1,B) -> (B,1), free reshape


def init_params(key):
    """PyTorch-nn.Linear-style uniform(+/- 1/sqrt(fan_in)) init.

    Layouts (out_features, in_features) for weights, column vectors for biases:
      w1: (HIDDEN1, INPUT_SIZE)   b1: (HIDDEN1, 1)
      w2: (HIDDEN2, HIDDEN1)      b2: (HIDDEN2, 1)
      w3: (OUTPUT_SIZE, HIDDEN2)  b3: (OUTPUT_SIZE, 1)
    """
    ks = jax.random.split(key, 6)

    def linear(kw, kb, fan_in, w_shape, b_shape):
        bound = 1.0 / jnp.sqrt(jnp.float32(fan_in))
        w = jax.random.uniform(kw, w_shape, jnp.float32, -bound, bound)
        b = jax.random.uniform(kb, b_shape, jnp.float32, -bound, bound)
        return w, b

    w1, b1 = linear(ks[0], ks[1], INPUT_SIZE, (HIDDEN1, INPUT_SIZE), (HIDDEN1, 1))
    w2, b2 = linear(ks[2], ks[3], HIDDEN1, (HIDDEN2, HIDDEN1), (HIDDEN2, 1))
    w3, b3 = linear(ks[4], ks[5], HIDDEN2, (OUTPUT_SIZE, HIDDEN2), (OUTPUT_SIZE, 1))
    return {"w1": w1, "b1": b1, "w2": w2, "b2": b2, "w3": w3, "b3": b3}


def _reference(x, params):
    h1 = jnp.maximum(
        jnp.dot(x, params["w1"].T, precision=_HIGHEST) + params["b1"].T, 0.0)
    h2 = jnp.maximum(
        jnp.dot(h1, params["w2"].T, precision=_HIGHEST) + params["b2"].T, 0.0)
    return jnp.dot(h2, params["w3"].T, precision=_HIGHEST) + params["b3"].T


if __name__ == "__main__":
    key = jax.random.PRNGKey(0)
    k_x, k_p, k_x2, k_x3 = jax.random.split(key, 4)
    params = init_params(k_p)

    # small batch (single grid step, single inner chunk)
    B = 8
    x = jax.random.normal(k_x, (B, INPUT_SIZE), jnp.float32)
    out = jax.block_until_ready(polynomial_regression_forward(x, params))
    ref = _reference(x, params)
    assert out.shape == (B, OUTPUT_SIZE)
    assert jnp.allclose(out, ref, atol=1e-5, rtol=1e-5)

    # ragged batch with several grid steps + masked last-block writeback
    B2 = 333
    x2 = jax.random.normal(k_x2, (B2, INPUT_SIZE), jnp.float32)
    out2 = jax.block_until_ready(
        polynomial_regression_forward(x2, params, block_b=128))
    ref2 = _reference(x2, params)
    assert out2.shape == (B2, OUTPUT_SIZE)
    assert jnp.allclose(out2, ref2, atol=1e-5, rtol=1e-5)

    # exercises the inner-loop remainder chunk (tb not a multiple of chunk)
    B3 = 1000
    x3 = jax.random.normal(k_x3, (B3, INPUT_SIZE), jnp.float32)
    out3 = jax.block_until_ready(
        polynomial_regression_forward(x3, params, block_b=384, chunk=256))
    ref3 = _reference(x3, params)
    assert out3.shape == (B3, OUTPUT_SIZE)
    assert jnp.allclose(out3, ref3, atol=1e-5, rtol=1e-5)

    print("KERNEL_OK")
</pallas_src>

<mosaic_0001>
module attributes {stable_mosaic.version = 11 : i64} {
  func.func @kernel(%arg0: i32, %arg1: memref<1x128xf32, #tpu.memory_space<vmem>>, %arg2: memref<20x2xf32, #tpu.memory_space<vmem>>, %arg3: memref<10x20xf32, #tpu.memory_space<vmem>>, %arg4: memref<10x1xf32, #tpu.memory_space<vmem>>, %arg5: memref<1x10xf32, #tpu.memory_space<vmem>>, %arg6: memref<1x1xf32, #tpu.memory_space<vmem>>, %arg7: memref<1x128xf32, #tpu.memory_space<vmem>>) attributes {dimension_semantics = [#tpu.dimension_semantics<parallel>], iteration_bounds = array<i64: 1>, scalar_prefetch = 0 : i64, scratch_operands = 0 : i64, tpu.core_type = #tpu.core_type<tc>, window_params = [{transform_indices = @transform_0, window_bounds = array<i64: 1, 128>}, {pipeline_mode = #tpu.pipeline_mode<synchronous>, transform_indices = @transform_1, window_bounds = array<i64: 20, 2>}, {pipeline_mode = #tpu.pipeline_mode<synchronous>, transform_indices = @transform_2, window_bounds = array<i64: 10, 20>}, {pipeline_mode = #tpu.pipeline_mode<synchronous>, transform_indices = @transform_3, window_bounds = array<i64: 10, 1>}, {pipeline_mode = #tpu.pipeline_mode<synchronous>, transform_indices = @transform_4, window_bounds = array<i64: 1, 10>}, {pipeline_mode = #tpu.pipeline_mode<synchronous>, transform_indices = @transform_5, window_bounds = array<i64: 1, 1>}, {transform_indices = @transform_6, window_bounds = array<i64: 1, 128>}]} {
    %c0 = arith.constant 0 : index
    %c0_0 = arith.constant 0 : index
    %0 = vector.load %arg2[%c0, %c0_0] : memref<20x2xf32, #tpu.memory_space<vmem>>, vector<20x2xf32>
    %c0_1 = arith.constant 0 : index
    %c0_2 = arith.constant 0 : index
    %1 = vector.load %arg3[%c0_1, %c0_2] : memref<10x20xf32, #tpu.memory_space<vmem>>, vector<10x20xf32>
    %c0_3 = arith.constant 0 : index
    %c0_4 = arith.constant 0 : index
    %2 = vector.load %arg4[%c0_3, %c0_4] : memref<10x1xf32, #tpu.memory_space<vmem>>, vector<10x1xf32>
    %c0_5 = arith.constant 0 : index
    %c0_6 = arith.constant 0 : index
    %3 = vector.load %arg5[%c0_5, %c0_6] : memref<1x10xf32, #tpu.memory_space<vmem>>, vector<1x10xf32>
    %c0_7 = arith.constant 0 : index
    %c0_8 = arith.constant 0 : index
    %4 = vector.load %arg6[%c0_7, %c0_8] : memref<1x1xf32, #tpu.memory_space<vmem>>, vector<1x1xf32>
    %cst = arith.constant 1.000000e+00 : f32
    %5 = vector.broadcast %cst : f32 to vector<1x128xf32>
    %6 = vector.shape_cast %2 : vector<10x1xf32> to vector<10x1xf32>
    %7 = vector.broadcast %6 : vector<10x1xf32> to vector<10x128xf32>
    %8 = vector.shape_cast %4 : vector<1x1xf32> to vector<1x1xf32>
    %9 = vector.broadcast %8 : vector<1x1xf32> to vector<1x128xf32>
    %c0_i32 = arith.constant 0 : i32
    %c128_i32 = arith.constant 128 : i32
    %10 = arith.muli %c0_i32, %c128_i32 : i32
    %11 = tpu.assume_multiple %10, 128 : i32
    %c0_9 = arith.constant 0 : index
    %12 = arith.index_cast %11 : i32 to index
    %13 = vector.load %arg1[%c0_9, %12] : memref<1x128xf32, #tpu.memory_space<vmem>>, vector<1x128xf32>
    %14 = tpu.concatenate %13, %5 in 0 : vector<1x128xf32>, vector<1x128xf32> -> vector<2x128xf32>
    %cst_10 = arith.constant dense<0.000000e+00> : vector<20x128xf32>
    %15 = tpu.matmul %0, %14, %cst_10 {dimension_numbers = #tpu.dot_dimension_numbers<[1], [0], [0], [1], [0, 0, 1, 1], [], []>, precision = #tpu.contract_precision<fp32>} : vector<20x2xf32>, vector<2x128xf32>, vector<20x128xf32> -> vector<20x128xf32>
    %cst_11 = arith.constant 0.000000e+00 : f32
    %16 = vector.broadcast %cst_11 : f32 to vector<20x128xf32>
    %17 = arith.maximumf %15, %16 : vector<20x128xf32>
    %cst_12 = arith.constant dense<0.000000e+00> : vector<10x128xf32>
    %18 = tpu.matmul %1, %17, %cst_12 {dimension_numbers = #tpu.dot_dimension_numbers<[1], [0], [0], [1], [0, 0, 1, 1], [], []>, precision = #tpu.contract_precision<fp32>} : vector<10x20xf32>, vector<20x128xf32>, vector<10x128xf32> -> vector<10x128xf32>
    %19 = arith.addf %18, %7 : vector<10x128xf32>
    %cst_13 = arith.constant 0.000000e+00 : f32
    %20 = vector.broadcast %cst_13 : f32 to vector<10x128xf32>
    %21 = arith.maximumf %19, %20 : vector<10x128xf32>
    %cst_14 = arith.constant dense<0.000000e+00> : vector<1x128xf32>
    %22 = tpu.matmul %3, %21, %cst_14 {dimension_numbers = #tpu.dot_dimension_numbers<[1], [0], [0], [1], [0, 0, 1, 1], [], []>, precision = #tpu.contract_precision<fp32>} : vector<1x10xf32>, vector<10x128xf32>, vector<1x128xf32> -> vector<1x128xf32>
    %23 = arith.addf %22, %9 : vector<1x128xf32>
    %c0_15 = arith.constant 0 : index
    %24 = arith.index_cast %11 : i32 to index
    %25 = vector.load %arg7[%c0_15, %24] : memref<1x128xf32, #tpu.memory_space<vmem>>, vector<1x128xf32>
    tpu.vector_store %arg7[%c0_15, %24], %23 {strides = array<i32>} : memref<1x128xf32, #tpu.memory_space<vmem>>, vector<1x128xf32>,
    %c1_i32 = arith.constant 1 : i32
    return
  }
  func.func @transform_0(%arg0: i32) -> (i32, i32) {
    %c0_i32 = arith.constant 0 : i32
    %c0_i32_0 = arith.constant 0 : i32
    return %c0_i32, %arg0 : i32, i32
  }
  func.func @transform_1(%arg0: i32) -> (i32, i32) {
    %c0_i32 = arith.constant 0 : i32
    %c0_i32_0 = arith.constant 0 : i32
    %c0_i32_1 = arith.constant 0 : i32
    return %c0_i32, %c0_i32_0 : i32, i32
  }
  func.func @transform_2(%arg0: i32) -> (i32, i32) {
    %c0_i32 = arith.constant 0 : i32
    %c0_i32_0 = arith.constant 0 : i32
    %c0_i32_1 = arith.constant 0 : i32
    return %c0_i32, %c0_i32_0 : i32, i32
  }
  func.func @transform_3(%arg0: i32) -> (i32, i32) {
    %c0_i32 = arith.constant 0 : i32
    %c0_i32_0 = arith.constant 0 : i32
    %c0_i32_1 = arith.constant 0 : i32
    return %c0_i32, %c0_i32_0 : i32, i32
  }
  func.func @transform_4(%arg0: i32) -> (i32, i32) {
    %c0_i32 = arith.constant 0 : i32
    %c0_i32_0 = arith.constant 0 : i32
    %c0_i32_1 = arith.constant 0 : i32
    return %c0_i32, %c0_i32_0 : i32, i32
  }
  func.func @transform_5(%arg0: i32) -> (i32, i32) {
    %c0_i32 = arith.constant 0 : i32
    %c0_i32_0 = arith.constant 0 : i32
    %c0_i32_1 = arith.constant 0 : i32
    return %c0_i32, %c0_i32_0 : i32, i32
  }
  func.func @transform_6(%arg0: i32) -> (i32, i32) {
    %c0_i32 = arith.constant 0 : i32
    %c0_i32_0 = arith.constant 0 : i32
    return %c0_i32, %arg0 : i32, i32
  }
}

</mosaic_0001>

<llo_original>
// kernel: tpu_custom_call.1
$region0: #{tpu_custom_call.1}
  #allocation0 [shape = 'u32[]', space=smem, size = 0x4, offset = 0x4, fixed_abs, tag = 'smem constant byte address 0x4 - core index']
  #allocation1 [shape = 'u32[144,128]{1,0:T(1,128)}', space=vmem, size = 0x12000, scoped, tag = 'internal scratch']
  #allocation2 [shape = 'f32[1,1]{1,0:T(1,128)S(1)}', space=vmem, size = 0x200, scoped, tag = 'scoped memory for tpu_custom_call.1']
  %s0 = inlined_call_operand.vmem [shape: f32[1,8], index: 0, kind: input, shape index: {}]
  %s1 = inlined_call_operand.vmem [shape: f32[20,2], index: 1, kind: input, shape index: {}]
  %s2 = inlined_call_operand.vmem [shape: f32[10,20], index: 2, kind: input, shape index: {}]
  %s3 = inlined_call_operand.vmem [shape: f32[10,1], index: 3, kind: input, shape index: {}]
  %s4 = inlined_call_operand.vmem [shape: f32[1,10], index: 4, kind: input, shape index: {}]
  %s5 = inlined_call_operand.<no memory space> [shape: f32[1,1], index: 5, kind: input, shape index: {}]
  %s6 = inlined_call_operand.hbm [shape: f32[1,8], index: 6, kind: output, shape index: {}]
  %s7 = sld [smem:[#allocation0]]
  $region34: #{tpu_custom_call.1} parent=0
    _
  %s9 = ssub.s32 1, %s7
  %s10 = scalar_select 0, %s9, %s7
  %v11 = vstv %s5
  %12 = vst [vmem:[#allocation2] sm:$0x1] %v11
  $region1: #{tpu_custom_call.1} parent=0
    #allocation3 [shape = 'u8[512]{0}', space=vmem, size = 0x400, scoped, tag = 'output window, operand 0, single buffered']
    #allocation4 [shape = 's32[1]{0}', space=sflag, size = 0x4, scoped, tag = 'scoped memory for tpu_custom_call.1']
    %13 = vsyncpa [#allocation4], 0
    // Predicated region
    $region2: #{tpu_custom_call.1} parent=1 // pred_check
      _
    $region3: #{tpu_custom_call.1} parent=1 // pred_check_branch
      %15 = sbr.rel (0) target = $region5
    $region4: #{tpu_custom_call.1} parent=1 // pred_region
      _
    $region5: #{tpu_custom_call.1} parent=1 // pred_fallthru
      _
    // Predicated region
    $region6: #{tpu_custom_call.1} parent=1 // pred_check
      _
    $region7: #{tpu_custom_call.1} parent=1 // pred_check_branch
      %17 = sbr.rel (0) target = $region9
    $region8: #{tpu_custom_call.1} parent=1 // pred_region
      _
    $region9: #{tpu_custom_call.1} parent=1 // pred_fallthru
      _
    // Predicated region
    $region10: #{tpu_custom_call.1} parent=1 // pred_check
      _
    $region11: #{tpu_custom_call.1} parent=1 // pred_check_branch
      %19 = sbr.rel (0) target = $region13
    $region12: #{tpu_custom_call.1} parent=1 // pred_region
      _
    $region13: #{tpu_custom_call.1} parent=1 // pred_fallthru
      _
    // Predicated region
    $region14: #{tpu_custom_call.1} parent=1 // pred_check
      _
    $region15: #{tpu_custom_call.1} parent=1 // pred_check_branch
      %21 = sbr.rel (0) target = $region17
    $region16: #{tpu_custom_call.1} parent=1 // pred_region
      _
    $region17: #{tpu_custom_call.1} parent=1 // pred_fallthru
      _
    // Predicated region
    $region18: #{tpu_custom_call.1} parent=1 // pred_check
      _
    $region19: #{tpu_custom_call.1} parent=1 // pred_check_branch
      %23 = sbr.rel (0) target = $region21
    $region20: #{tpu_custom_call.1} parent=1 // pred_region
      _
    $region21: #{tpu_custom_call.1} parent=1 // pred_fallthru
      _
    // Predicated region
    $region22: #{tpu_custom_call.1} parent=1 // pred_check
      _
    $region23: #{tpu_custom_call.1} parent=1 // pred_check_branch
      %25 = sbr.rel (0) target = $region25
    $region24: #{tpu_custom_call.1} parent=1 // pred_region
      _
    $region25: #{tpu_custom_call.1} parent=1 // pred_fallthru
      _
    %v26 = vld [vmem:[%s1] sm:$0xff]
    %v27 = vld [vmem:[%s1 + $0x8] sm:$0xff]
    %v28 = vld [vmem:[%s1 + $0x10] sm:$0xf]
    %v29 = vld [vmem:[%s2] sm:$0xff]
    %v30 = vld [vmem:[%s2 + $0x8] sm:$0x3]
    %v31 = vld [vmem:[%s3] sm:$0xff]
    %v32 = vld [vmem:[%s3 + $0x8] sm:$0x3]
    %v33 = vld [vmem:[%s4] sm:$0x1]
    %v34 = vld [vmem:[#allocation2] sm:$0x1]
    %36 = vset.pattern.permute.xlu0 0
    %37 = vperm.xlu0 %36, %v31
    %v38 = vpop.permute.xlu0 %37
    %41 = vset.pattern.permute.xlu0 0
    %42 = vperm.xlu0 %41, %v32
    %v43 = vpop.permute.xlu0 %42
    %46 = vset.pattern.permute.xlu0 0
    %47 = vperm.xlu0 %46, %v34
    %v48 = vpop.permute.xlu0 %47
    %v50 = vlaneseq
    %v51 = vshrl.u32 %v50, 7
    %v52 = vsub.s32 0, %v51
    %v53 = vrot.slane %v48, %v52
    %v54 = vld [vmem:[%s0] sm:$0x1]
    %vm55 = vcmask 1040384
    %v56 = vsel %vm55, %v54, 1.0
    %vm57 = vcmask 15360
    %v59 = vsel %vm57, %v26, 0
    %v62 = vsel %vm57, %v27, 0
    %v65 = vsel %vm57, %v28, 0
    %vm67 = vcmask 1041408
    %v69 = vsel %vm67, %v56, 0
    %71 = vmatprep.subr.mxu0 0.0
    %v72 = vand.u32 %v69, 4294901760
    %73 = vmatpush1.msra.mxu0 %v72
    %74 = vmatprep.subr.mxu0 0.0
    %75 = vmatpush1.msra.mxu0 0.0
    %76 = vmatprep.subr.mxu0 0.0
    %77 = vmatpush1.msra.mxu0 0.0
    %78 = vmatprep.subr.mxu0 0.0
    %79 = vmatpush1.msra.mxu0 0.0
    %80 = vmatprep.subr.mxu0 0.0
    %81 = vmatpush1.msra.mxu0 0.0
    %82 = vmatprep.subr.mxu0 0.0
    %83 = vmatpush1.msra.mxu0 0.0
    %84 = vmatprep.subr.mxu0 0.0
    %85 = vmatpush1.msra.mxu0 0.0
    %86 = vmatprep.subr.mxu0 0.0
    %87 = vmatpush1.msra.mxu0 0.0
    %88 = vmatprep.subr.mxu0 0.0
    %89 = vmatpush1.msra.mxu0 0.0
    %90 = vmatprep.subr.mxu0 0.0
    %91 = vmatpush1.msra.mxu0 0.0
    %92 = vmatprep.subr.mxu0 0.0
    %93 = vmatpush1.msra.mxu0 0.0
    %94 = vmatprep.subr.mxu0 0.0
    %95 = vmatpush1.msra.mxu0 0.0
    %96 = vmatprep.subr.mxu0 0.0
    %97 = vmatpush1.msra.mxu0 0.0
    %98 = vmatprep.subr.mxu0 0.0
    %99 = vmatpush1.msra.mxu0 0.0
    %100 = vmatprep.subr.mxu0 0.0
    %101 = vmatpush1.msra.mxu0 0.0
    %102 = vmatprep.subr.mxu0 0.0
    %103 = vmatpush1.msra.mxu0 0.0
    %104 = vmatprep.subr.mxu0 0.0
    %105 = vmatpush1.msra.mxu0 0.0
    %106 = vmatprep.subr.mxu0 0.0
    %107 = vmatpush1.msra.mxu0 0.0
    %108 = vmatprep.subr.mxu0 0.0
    %109 = vmatpush1.msra.mxu0 0.0
    %110 = vmatprep.subr.mxu0 0.0
    %111 = vmatpush1.msra.mxu0 0.0
    %112 = vmatprep.subr.mxu0 0.0
    %113 = vmatpush1.msra.mxu0 0.0
    %114 = vmatprep.subr.mxu0 0.0
    %115 = vmatpush1.msra.mxu0 0.0
    %116 = vmatprep.subr.mxu0 0.0
    %117 = vmatpush1.msra.mxu0 0.0
    %118 = vmatprep.subr.mxu0 0.0
    %119 = vmatpush1.msra.mxu0 0.0
    %120 = vmatprep.subr.mxu0 0.0
    %121 = vmatpush1.msra.mxu0 0.0
    %122 = vmatprep.subr.mxu0 0.0
    %123 = vmatpush1.msra.mxu0 0.0
    %124 = vmatprep.subr.mxu0 0.0
    %125 = vmatpush1.msra.mxu0 0.0
    %126 = vmatprep.subr.mxu0 0.0
    %127 = vmatpush1.msra.mxu0 0.0
    %128 = vmatprep.subr.mxu0 0.0
    %129 = vmatpush1.msra.mxu0 0.0
    %130 = vmatprep.subr.mxu0 0.0
    %131 = vmatpush1.msra.mxu0 0.0
    %132 = vmatprep.subr.mxu0 0.0
    %133 = vmatpush1.msra.mxu0 0.0
    %134 = vmatprep.subr.mxu0 0.0
    %135 = vmatpush1.msra.mxu0 0.0
    %136 = vmatprep.mubr.f32.mxu0 0.0
    %v137 = vand.u32 %v59, 4294901760
    %v138 = vsub.f32 %v59, %v137
    %v139 = vand.u32 %v138, 4294901760
    %v140 = vsub.f32 %v138, %v139
    %v141 = vand.u32 %v140, 4294901760
    %142 = vmatmul.mubr.f32.gmra.mrb[0].mxu0 %v141
    %v143 = vpop.f32.mrb[0].mxu0
    %v144 = vadd.f32 0.0, %v143
    %v145 = vpop.f32.mrb[0].mxu0
    %146 = vmatprep.mubr.f32.mxu0 0.0
    %v147 = vand.u32 %v62, 4294901760
    %v148 = vsub.f32 %v62, %v147
    %v149 = vand.u32 %v148, 4294901760
    %v150 = vsub.f32 %v148, %v149
    %v151 = vand.u32 %v150, 4294901760
    %152 = vmatmul.mubr.f32.gmra.mrb[0].mxu0 %v151
    %v153 = vpop.f32.mrb[0].mxu0
    %v154 = vadd.f32 0.0, %v153
    %v155 = vpop.f32.mrb[0].mxu0
    %156 = vmatprep.mubr.f32.mxu0 0.0
    %v157 = vand.u32 %v65, 4294901760
    %v158 = vsub.f32 %v65, %v157
    %v159 = vand.u32 %v158, 4294901760
    %v160 = vsub.f32 %v158, %v159
    %v161 = vand.u32 %v160, 4294901760
    %162 = vmatmul.mubr.f32.gmra.mrb[0].mxu0 %v161
    %v163 = vpop.f32.mrb[0].mxu0
    %v164 = vadd.f32 0.0, %v163
    %v165 = vpop.f32.mrb[0].mxu0
    %166 = vdwg.mxu0
    %167 = vmatprep.subr.mxu0 0.0
    %v168 = vand.u32 %v69, 4294901760
    %v169 = vsub.f32 %v69, %v168
    %v170 = vand.u32 %v169, 4294901760
    %v171 = vsub.f32 %v169, %v170
    %v172 = vand.u32 %v171, 4294901760
    %173 = vmatpush1.msra.mxu0 %v172
    %174 = vmatprep.subr.mxu0 0.0
    %175 = vmatpush1.msra.mxu0 0.0
    %176 = vmatprep.subr.mxu0 0.0
    %177 = vmatpush1.msra.mxu0 0.0
    %178 = vmatprep.subr.mxu0 0.0
    %179 = vmatpush1.msra.mxu0 0.0
    %180 = vmatprep.subr.mxu0 0.0
    %181 = vmatpush1.msra.mxu0 0.0
    %182 = vmatprep.subr.mxu0 0.0
    %183 = vmatpush1.msra.mxu0 0.0
    %184 = vmatprep.subr.mxu0 0.0
    %185 = vmatpush1.msra.mxu0 0.0
    %186 = vmatprep.subr.mxu0 0.0
    %187 = vmatpush1.msra.mxu0 0.0
    %188 = vmatprep.subr.mxu0 0.0
    %189 = vmatpush1.msra.mxu0 0.0
    %190 = vmatprep.subr.mxu0 0.0
    %191 = vmatpush1.msra.mxu0 0.0
    %192 = vmatprep.subr.mxu0 0.0
    %193 = vmatpush1.msra.mxu0 0.0
    %194 = vmatprep.subr.mxu0 0.0
    %195 = vmatpush1.msra.mxu0 0.0
    %196 = vmatprep.subr.mxu0 0.0
    %197 = vmatpush1.msra.mxu0 0.0
    %198 = vmatprep.subr.mxu0 0.0
    %199 = vmatpush1.msra.mxu0 0.0
    %200 = vmatprep.subr.mxu0 0.0
    %201 = vmatpush1.msra.mxu0 0.0
    %202 = vmatprep.subr.mxu0 0.0
    %203 = vmatpush1.msra.mxu0 0.0
    %204 = vmatprep.subr.mxu0 0.0
    %205 = vmatpush1.msra.mxu0 0.0
    %206 = vmatprep.subr.mxu0 0.0
    %207 = vmatpush1.msra.mxu0 0.0
    %208 = vmatprep.subr.mxu0 0.0
    %209 = vmatpush1.msra.mxu0 0.0
    %210 = vmatprep.subr.mxu0 0.0
    %211 = vmatpush1.msra.mxu0 0.0
    %212 = vmatprep.subr.mxu0 0.0
    %213 = vmatpush1.msra.mxu0 0.0
    %214 = vmatprep.subr.mxu0 0.0
    %215 = vmatpush1.msra.mxu0 0.0
    %216 = vmatprep.subr.mxu0 0.0
    %217 = vmatpush1.msra.mxu0 0.0
    %218 = vmatprep.subr.mxu0 0.0
    %219 = vmatpush1.msra.mxu0 0.0
    %220 = vmatprep.subr.mxu0 0.0
    %221 = vmatpush1.msra.mxu0 0.0
    %222 = vmatprep.subr.mxu0 0.0
    %223 = vmatpush1.msra.mxu0 0.0
    %224 = vmatprep.subr.mxu0 0.0
    %225 = vmatpush1.msra.mxu0 0.0
    %226 = vmatprep.subr.mxu0 0.0
    %227 = vmatpush1.msra.mxu0 0.0
    %228 = vmatprep.subr.mxu0 0.0
    %229 = vmatpush1.msra.mxu0 0.0
    %230 = vmatprep.subr.mxu0 0.0
    %231 = vmatpush1.msra.mxu0 0.0
    %232 = vmatprep.subr.mxu0 0.0
    %233 = vmatpush1.msra.mxu0 0.0
    %234 = vmatprep.subr.mxu0 0.0
    %235 = vmatpush1.msra.mxu0 0.0
    %236 = vmatprep.mubr.f32.mxu0 0.0
    %v237 = vand.u32 %v59, 4294901760
    %238 = vmatmul.mubr.f32.gmra.mrb[0].mxu0 %v237
    %v239 = vpop.f32.mrb[0].mxu0
    %v240 = vadd.f32 %v144, %v239
    %v241 = vpop.f32.mrb[0].mxu0
    %242 = vmatprep.mubr.f32.mxu0 0.0
    %v243 = vand.u32 %v62, 4294901760
    %244 = vmatmul.mubr.f32.gmra.mrb[0].mxu0 %v243
    %v245 = vpop.f32.mrb[0].mxu0
    %v246 = vadd.f32 %v154, %v245
    %v247 = vpop.f32.mrb[0].mxu0
    %248 = vmatprep.mubr.f32.mxu0 0.0
    %v249 = vand.u32 %v65, 4294901760
    %250 = vmatmul.mubr.f32.gmra.mrb[0].mxu0 %v249
    %v251 = vpop.f32.mrb[0].mxu0
    %v252 = vadd.f32 %v164, %v251
    %v253 = vpop.f32.mrb[0].mxu0
    %254 = vdwg.mxu0
    %255 = vmatprep.subr.mxu0 0.0
    %v256 = vand.u32 %v69, 4294901760
    %v257 = vsub.f32 %v69, %v256
    %258 = vmatpush1.msra.mxu0 %v257
    %259 = vmatprep.subr.mxu0 0.0
    %260 = vmatpush1.msra.mxu0 0.0
    %261 = vmatprep.subr.mxu0 0.0
    %262 = vmatpush1.msra.mxu0 0.0
    %263 = vmatprep.subr.mxu0 0.0
    %264 = vmatpush1.msra.mxu0 0.0
    %265 = vmatprep.subr.mxu0 0.0
    %266 = vmatpush1.msra.mxu0 0.0
    %267 = vmatprep.subr.mxu0 0.0
    %268 = vmatpush1.msra.mxu0 0.0
    %269 = vmatprep.subr.mxu0 0.0
    %270 = vmatpush1.msra.mxu0 0.0
    %271 = vmatprep.subr.mxu0 0.0
    %272 = vmatpush1.msra.mxu0 0.0
    %273 = vmatprep.subr.mxu0 0.0
    %274 = vmatpush1.msra.mxu0 0.0
    %275 = vmatprep.subr.mxu0 0.0
    %276 = vmatpush1.msra.mxu0 0.0
    %277 = vmatprep.subr.mxu0 0.0
    %278 = vmatpush1.msra.mxu0 0.0
    %279 = vmatprep.subr.mxu0 0.0
    %280 = vmatpush1.msra.mxu0 0.0
    %281 = vmatprep.subr.mxu0 0.0
    %282 = vmatpush1.msra.mxu0 0.0
    %283 = vmatprep.subr.mxu0 0.0
    %284 = vmatpush1.msra.mxu0 0.0
    %285 = vmatprep.subr.mxu0 0.0
    %286 = vmatpush1.msra.mxu0 0.0
    %287 = vmatprep.subr.mxu0 0.0
    %288 = vmatpush1.msra.mxu0 0.0
    %289 = vmatprep.subr.mxu0 0.0
    %290 = vmatpush1.msra.mxu0 0.0
    %291 = vmatprep.subr.mxu0 0.0
    %292 = vmatpush1.msra.mxu0 0.0
    %293 = vmatprep.subr.mxu0 0.0
    %294 = vmatpush1.msra.mxu0 0.0
    %295 = vmatprep.subr.mxu0 0.0
    %296 = vmatpush1.msra.mxu0 0.0
    %297 = vmatprep.subr.mxu0 0.0
    %298 = vmatpush1.msra.mxu0 0.0
    %299 = vmatprep.subr.mxu0 0.0
    %300 = vmatpush1.msra.mxu0 0.0
    %301 = vmatprep.subr.mxu0 0.0
    %302 = vmatpush1.msra.mxu0 0.0
    %303 = vmatprep.subr.mxu0 0.0
    %304 = vmatpush1.msra.mxu0 0.0
    %305 = vmatprep.subr.mxu0 0.0
    %306 = vmatpush1.msra.mxu0 0.0
    %307 = vmatprep.subr.mxu0 0.0
    %308 = vmatpush1.msra.mxu0 0.0
    %309 = vmatprep.subr.mxu0 0.0
    %310 = vmatpush1.msra.mxu0 0.0
    %311 = vmatprep.subr.mxu0 0.0
    %312 = vmatpush1.msra.mxu0 0.0
    %313 = vmatprep.subr.mxu0 0.0
    %314 = vmatpush1.msra.mxu0 0.0
    %315 = vmatprep.subr.mxu0 0.0
    %316 = vmatpush1.msra.mxu0 0.0
    %317 = vmatprep.subr.mxu0 0.0
    %318 = vmatpush1.msra.mxu0 0.0
    %319 = vmatprep.subr.mxu0 0.0
    %320 = vmatpush1.msra.mxu0 0.0
    %321 = vmatprep.mubr.f32.mxu0 0.0
    %v322 = vand.u32 %v59, 4294901760
    %v323 = vsub.f32 %v59, %v322
    %324 = vmatmul.mubr.f32.gmra.mrb[0].mxu0 %v323
    %v325 = vpop.f32.mrb[0].mxu0
    %v326 = vadd.f32 %v240, %v325
    %v327 = vpop.f32.mrb[0].mxu0
    %328 = vmatprep.mubr.f32.mxu0 0.0
    %v329 = vand.u32 %v62, 4294901760
    %v330 = vsub.f32 %v62, %v329
    %331 = vmatmul.mubr.f32.gmra.mrb[0].mxu0 %v330
    %v332 = vpop.f32.mrb[0].mxu0
    %v333 = vadd.f32 %v246, %v332
    %v334 = vpop.f32.mrb[0].mxu0
    %335 = vmatprep.mubr.f32.mxu0 0.0
    %v336 = vand.u32 %v65, 4294901760
    %v337 = vsub.f32 %v65, %v336
    %338 = vmatmul.mubr.f32.gmra.mrb[0].mxu0 %v337
    %v339 = vpop.f32.mrb[0].mxu0
    %v340 = vadd.f32 %v252, %v339
    %v341 = vpop.f32.mrb[0].mxu0
    %342 = vdwg.mxu0
    %343 = vmatprep.subr.mxu0 0.0
    %v344 = vand.u32 %v69, 4294901760
    %345 = vmatpush1.msra.mxu0 %v344
    %346 = vmatprep.subr.mxu0 0.0
    %347 = vmatpush1.msra.mxu0 0.0
    %348 = vmatprep.subr.mxu0 0.0
    %349 = vmatpush1.msra.mxu0 0.0
    %350 = vmatprep.subr.mxu0 0.0
    %351 = vmatpush1.msra.mxu0 0.0
    %352 = vmatprep.subr.mxu0 0.0
    %353 = vmatpush1.msra.mxu0 0.0
    %354 = vmatprep.subr.mxu0 0.0
    %355 = vmatpush1.msra.mxu0 0.0
    %356 = vmatprep.subr.mxu0 0.0
    %357 = vmatpush1.msra.mxu0 0.0
    %358 = vmatprep.subr.mxu0 0.0
    %359 = vmatpush1.msra.mxu0 0.0
    %360 = vmatprep.subr.mxu0 0.0
    %361 = vmatpush1.msra.mxu0 0.0
    %362 = vmatprep.subr.mxu0 0.0
    %363 = vmatpush1.msra.mxu0 0.0
    %364 = vmatprep.subr.mxu0 0.0
    %365 = vmatpush1.msra.mxu0 0.0
    %366 = vmatprep.subr.mxu0 0.0
    %367 = vmatpush1.msra.mxu0 0.0
    %368 = vmatprep.subr.mxu0 0.0
    %369 = vmatpush1.msra.mxu0 0.0
    %370 = vmatprep.subr.mxu0 0.0
    %371 = vmatpush1.msra.mxu0 0.0
    %372 = vmatprep.subr.mxu0 0.0
    %373 = vmatpush1.msra.mxu0 0.0
    %374 = vmatprep.subr.mxu0 0.0
    %375 = vmatpush1.msra.mxu0 0.0
    %376 = vmatprep.subr.mxu0 0.0
    %377 = vmatpush1.msra.mxu0 0.0
    %378 = vmatprep.subr.mxu0 0.0
    %379 = vmatpush1.msra.mxu0 0.0
    %380 = vmatprep.subr.mxu0 0.0
    %381 = vmatpush1.msra.mxu0 0.0
    %382 = vmatprep.subr.mxu0 0.0
    %383 = vmatpush1.msra.mxu0 0.0
    %384 = vmatprep.subr.mxu0 0.0
    %385 = vmatpush1.msra.mxu0 0.0
    %386 = vmatprep.subr.mxu0 0.0
    %387 = vmatpush1.msra.mxu0 0.0
    %388 = vmatprep.subr.mxu0 0.0
    %389 = vmatpush1.msra.mxu0 0.0
    %390 = vmatprep.subr.mxu0 0.0
    %391 = vmatpush1.msra.mxu0 0.0
    %392 = vmatprep.subr.mxu0 0.0
    %393 = vmatpush1.msra.mxu0 0.0
    %394 = vmatprep.subr.mxu0 0.0
    %395 = vmatpush1.msra.mxu0 0.0
    %396 = vmatprep.subr.mxu0 0.0
    %397 = vmatpush1.msra.mxu0 0.0
    %398 = vmatprep.subr.mxu0 0.0
    %399 = vmatpush1.msra.mxu0 0.0
    %400 = vmatprep.subr.mxu0 0.0
    %401 = vmatpush1.msra.mxu0 0.0
    %402 = vmatprep.subr.mxu0 0.0
    %403 = vmatpush1.msra.mxu0 0.0
    %404 = vmatprep.subr.mxu0 0.0
    %405 = vmatpush1.msra.mxu0 0.0
    %406 = vmatprep.subr.mxu0 0.0
    %407 = vmatpush1.msra.mxu0 0.0
    %408 = vmatprep.mubr.f32.mxu0 0.0
    %v409 = vand.u32 %v59, 4294901760
    %v410 = vsub.f32 %v59, %v409
    %v411 = vand.u32 %v410, 4294901760
    %412 = vmatmul.mubr.f32.gmra.mrb[0].mxu0 %v411
    %v413 = vpop.f32.mrb[0].mxu0
    %v414 = vadd.f32 %v326, %v413
    %v415 = vpop.f32.mrb[0].mxu0
    %416 = vmatprep.mubr.f32.mxu0 0.0
    %v417 = vand.u32 %v62, 4294901760
    %v418 = vsub.f32 %v62, %v417
    %v419 = vand.u32 %v418, 4294901760
    %420 = vmatmul.mubr.f32.gmra.mrb[0].mxu0 %v419
    %v421 = vpop.f32.mrb[0].mxu0
    %v422 = vadd.f32 %v333, %v421
    %v423 = vpop.f32.mrb[0].mxu0
    %424 = vmatprep.mubr.f32.mxu0 0.0
    %v425 = vand.u32 %v65, 4294901760
    %v426 = vsub.f32 %v65, %v425
    %v427 = vand.u32 %v426, 4294901760
    %428 = vmatmul.mubr.f32.gmra.mrb[0].mxu0 %v427
    %v429 = vpop.f32.mrb[0].mxu0
    %v430 = vadd.f32 %v340, %v429
    %v431 = vpop.f32.mrb[0].mxu0
    %432 = vdwg.mxu0
    %433 = vmatprep.subr.mxu0 0.0
    %v434 = vand.u32 %v69, 4294901760
    %v435 = vsub.f32 %v69, %v434
    %v436 = vand.u32 %v435, 4294901760
    %437 = vmatpush1.msra.mxu0 %v436
    %438 = vmatprep.subr.mxu0 0.0
    %439 = vmatpush1.msra.mxu0 0.0
    %440 = vmatprep.subr.mxu0 0.0
    %441 = vmatpush1.msra.mxu0 0.0
    %442 = vmatprep.subr.mxu0 0.0
    %443 = vmatpush1.msra.mxu0 0.0
    %444 = vmatprep.subr.mxu0 0.0
    %445 = vmatpush1.msra.mxu0 0.0
    %446 = vmatprep.subr.mxu0 0.0
    %447 = vmatpush1.msra.mxu0 0.0
    %448 = vmatprep.subr.mxu0 0.0
    %449 = vmatpush1.msra.mxu0 0.0
    %450 = vmatprep.subr.mxu0 0.0
    %451 = vmatpush1.msra.mxu0 0.0
    %452 = vmatprep.subr.mxu0 0.0
    %453 = vmatpush1.msra.mxu0 0.0
    %454 = vmatprep.subr.mxu0 0.0
    %455 = vmatpush1.msra.mxu0 0.0
    %456 = vmatprep.subr.mxu0 0.0
    %457 = vmatpush1.msra.mxu0 0.0
    %458 = vmatprep.subr.mxu0 0.0
    %459 = vmatpush1.msra.mxu0 0.0
    %460 = vmatprep.subr.mxu0 0.0
    %461 = vmatpush1.msra.mxu0 0.0
    %462 = vmatprep.subr.mxu0 0.0
    %463 = vmatpush1.msra.mxu0 0.0
    %464 = vmatprep.subr.mxu0 0.0
    %465 = vmatpush1.msra.mxu0 0.0
    %466 = vmatprep.subr.mxu0 0.0
    %467 = vmatpush1.msra.mxu0 0.0
    %468 = vmatprep.subr.mxu0 0.0
    %469 = vmatpush1.msra.mxu0 0.0
    %470 = vmatprep.subr.mxu0 0.0
    %471 = vmatpush1.msra.mxu0 0.0
    %472 = vmatprep.subr.mxu0 0.0
    %473 = vmatpush1.msra.mxu0 0.0
    %474 = vmatprep.subr.mxu0 0.0
    %475 = vmatpush1.msra.mxu0 0.0
    %476 = vmatprep.subr.mxu0 0.0
    %477 = vmatpush1.msra.mxu0 0.0
    %478 = vmatprep.subr.mxu0 0.0
    %479 = vmatpush1.msra.mxu0 0.0
    %480 = vmatprep.subr.mxu0 0.0
    %481 = vmatpush1.msra.mxu0 0.0
    %482 = vmatprep.subr.mxu0 0.0
    %483 = vmatpush1.msra.mxu0 0.0
    %484 = vmatprep.subr.mxu0 0.0
    %485 = vmatpush1.msra.mxu0 0.0
    %486 = vmatprep.subr.mxu0 0.0
    %487 = vmatpush1.msra.mxu0 0.0
    %488 = vmatprep.subr.mxu0 0.0
    %489 = vmatpush1.msra.mxu0 0.0
    %490 = vmatprep.subr.mxu0 0.0
    %491 = vmatpush1.msra.mxu0 0.0
    %492 = vmatprep.subr.mxu0 0.0
    %493 = vmatpush1.msra.mxu0 0.0
    %494 = vmatprep.subr.mxu0 0.0
    %495 = vmatpush1.msra.mxu0 0.0
    %496 = vmatprep.subr.mxu0 0.0
    %497 = vmatpush1.msra.mxu0 0.0
    %498 = vmatprep.subr.mxu0 0.0
    %499 = vmatpush1.msra.mxu0 0.0
    %500 = vmatprep.mubr.f32.mxu0 0.0
    %v501 = vand.u32 %v59, 4294901760
    %502 = vmatmul.mubr.f32.gmra.mrb[0].mxu0 %v501
    %v503 = vpop.f32.mrb[0].mxu0
    %v504 = vadd.f32 %v414, %v503
    %v505 = vpop.f32.mrb[0].mxu0
    %506 = vmatprep.mubr.f32.mxu0 0.0
    %v507 = vand.u32 %v62, 4294901760
    %508 = vmatmul.mubr.f32.gmra.mrb[0].mxu0 %v507
    %v509 = vpop.f32.mrb[0].mxu0
    %v510 = vadd.f32 %v422, %v509
    %v511 = vpop.f32.mrb[0].mxu0
    %512 = vmatprep.mubr.f32.mxu0 0.0
    %v513 = vand.u32 %v65, 4294901760
    %514 = vmatmul.mubr.f32.gmra.mrb[0].mxu0 %v513
    %v515 = vpop.f32.mrb[0].mxu0
    %v516 = vadd.f32 %v430, %v515
    %v517 = vpop.f32.mrb[0].mxu0
    %518 = vdwg.mxu0
    %519 = vmatprep.subr.mxu0 0.0
    %v520 = vand.u32 %v69, 4294901760
    %521 = vmatpush1.msra.mxu0 %v520
    %522 = vmatprep.subr.mxu0 0.0
    %523 = vmatpush1.msra.mxu0 0.0
    %524 = vmatprep.subr.mxu0 0.0
    %525 = vmatpush1.msra.mxu0 0.0
    %526 = vmatprep.subr.mxu0 0.0
    %527 = vmatpush1.msra.mxu0 0.0
    %528 = vmatprep.subr.mxu0 0.0
    %529 = vmatpush1.msra.mxu0 0.0
    %530 = vmatprep.subr.mxu0 0.0
    %531 = vmatpush1.msra.mxu0 0.0
    %532 = vmatprep.subr.mxu0 0.0
    %533 = vmatpush1.msra.mxu0 0.0
    %534 = vmatprep.subr.mxu0 0.0
    %535 = vmatpush1.msra.mxu0 0.0
    %536 = vmatprep.subr.mxu0 0.0
    %537 = vmatpush1.msra.mxu0 0.0
    %538 = vmatprep.subr.mxu0 0.0
    %539 = vmatpush1.msra.mxu0 0.0
    %540 = vmatprep.subr.mxu0 0.0
    %541 = vmatpush1.msra.mxu0 0.0
    %542 = vmatprep.subr.mxu0 0.0
    %543 = vmatpush1.msra.mxu0 0.0
    %544 = vmatprep.subr.mxu0 0.0
    %545 = vmatpush1.msra.mxu0 0.0
    %546 = vmatprep.subr.mxu0 0.0
    %547 = vmatpush1.msra.mxu0 0.0
    %548 = vmatprep.subr.mxu0 0.0
    %549 = vmatpush1.msra.mxu0 0.0
    %550 = vmatprep.subr.mxu0 0.0
    %551 = vmatpush1.msra.mxu0 0.0
    %552 = vmatprep.subr.mxu0 0.0
    %553 = vmatpush1.msra.mxu0 0.0
    %554 = vmatprep.subr.mxu0 0.0
    %555 = vmatpush1.msra.mxu0 0.0
    %556 = vmatprep.subr.mxu0 0.0
    %557 = vmatpush1.msra.mxu0 0.0
    %558 = vmatprep.subr.mxu0 0.0
    %559 = vmatpush1.msra.mxu0 0.0
    %560 = vmatprep.subr.mxu0 0.0
    %561 = vmatpush1.msra.mxu0 0.0
    %562 = vmatprep.subr.mxu0 0.0
    %563 = vmatpush1.msra.mxu0 0.0
    %564 = vmatprep.subr.mxu0 0.0
    %565 = vmatpush1.msra.mxu0 0.0
    %566 = vmatprep.subr.mxu0 0.0
    %567 = vmatpush1.msra.mxu0 0.0
    %568 = vmatprep.subr.mxu0 0.0
    %569 = vmatpush1.msra.mxu0 0.0
    %570 = vmatprep.subr.mxu0 0.0
    %571 = vmatpush1.msra.mxu0 0.0
    %572 = vmatprep.subr.mxu0 0.0
    %573 = vmatpush1.msra.mxu0 0.0
    %574 = vmatprep.subr.mxu0 0.0
    %575 = vmatpush1.msra.mxu0 0.0
    %576 = vmatprep.subr.mxu0 0.0
    %577 = vmatpush1.msra.mxu0 0.0
    %578 = vmatprep.subr.mxu0 0.0
    %579 = vmatpush1.msra.mxu0 0.0
    %580 = vmatprep.subr.mxu0 0.0
    %581 = vmatpush1.msra.mxu0 0.0
    %582 = vmatprep.subr.mxu0 0.0
    %583 = vmatpush1.msra.mxu0 0.0
    %584 = vmatprep.mubr.f32.mxu0 0.0
    %v585 = vand.u32 %v59, 4294901760
    %586 = vmatmul.mubr.f32.gmra.mrb[0].mxu0 %v585
    %v587 = vpop.f32.mrb[0].mxu0
    %v588 = vadd.f32 %v504, %v587
    %v589 = vpop.f32.mrb[0].mxu0
    %590 = vmatprep.mubr.f32.mxu0 0.0
    %v591 = vand.u32 %v62, 4294901760
    %592 = vmatmul.mubr.f32.gmra.mrb[0].mxu0 %v591
    %v593 = vpop.f32.mrb[0].mxu0
    %v594 = vadd.f32 %v510, %v593
    %v595 = vpop.f32.mrb[0].mxu0
    %596 = vmatprep.mubr.f32.mxu0 0.0
    %v597 = vand.u32 %v65, 4294901760
    %598 = vmatmul.mubr.f32.gmra.mrb[0].mxu0 %v597
    %v599 = vpop.f32.mrb[0].mxu0
    %v600 = vadd.f32 %v516, %v599
    %v601 = vpop.f32.mrb[0].mxu0
    %602 = vdwg.mxu0
    %v603 = vmax.f32 %v588, 0.0
    %v604 = vmax.f32 %v594, 0.0
    %v605 = vmax.f32 %v600, 0.0
    %vm606 = vcmask 162816
    %v608 = vsel %vm606, %v29, 0
    %v611 = vsel %vm606, %v30, 0
    %vm613 = vcmask 1043456
    %v615 = vsel %vm613, %v605, 0
    %617 = vmatprep.subr.mxu0 0.0
    %v618 = vand.u32 %v603, 4294901760
    %619 = vmatpush1.msra.mxu0 %v618
    %620 = vmatprep.subr.mxu0 0.0
    %v621 = vand.u32 %v604, 4294901760
    %622 = vmatpush1.msra.mxu0 %v621
    %623 = vmatprep.subr.mxu0 0.0
    %v624 = vand.u32 %v615, 4294901760
    %625 = vmatpush1.msra.mxu0 %v624
    %626 = vmatprep.subr.mxu0 0.0
    %627 = vmatpush1.msra.mxu0 0.0
    %628 = vmatprep.subr.mxu0 0.0
    %629 = vmatpush1.msra.mxu0 0.0
    %630 = vmatprep.subr.mxu0 0.0
    %631 = vmatpush1.msra.mxu0 0.0
    %632 = vmatprep.subr.mxu0 0.0
    %633 = vmatpush1.msra.mxu0 0.0
    %634 = vmatprep.subr.mxu0 0.0
    %635 = vmatpush1.msra.mxu0 0.0
    %636 = vmatprep.subr.mxu0 0.0
    %637 = vmatpush1.msra.mxu0 0.0
    %638 = vmatprep.subr.mxu0 0.0
    %639 = vmatpush1.msra.mxu0 0.0
    %640 = vmatprep.subr.mxu0 0.0
    %641 = vmatpush1.msra.mxu0 0.0
    %642 = vmatprep.subr.mxu0 0.0
    %643 = vmatpush1.msra.mxu0 0.0
    %644 = vmatprep.subr.mxu0 0.0
    %645 = vmatpush1.msra.mxu0 0.0
    %646 = vmatprep.subr.mxu0 0.0
    %647 = vmatpush1.msra.mxu0 0.0
    %648 = vmatprep.subr.mxu0 0.0
    %649 = vmatpush1.msra.mxu0 0.0
    %650 = vmatprep.subr.mxu0 0.0
    %651 = vmatpush1.msra.mxu0 0.0
    %652 = vmatprep.subr.mxu0 0.0
    %653 = vmatpush1.msra.mxu0 0.0
    %654 = vmatprep.subr.mxu0 0.0
    %655 = vmatpush1.msra.mxu0 0.0
    %656 = vmatprep.subr.mxu0 0.0
    %657 = vmatpush1.msra.mxu0 0.0
    %658 = vmatprep.subr.mxu0 0.0
    %659 = vmatpush1.msra.mxu0 0.0
    %660 = vmatprep.subr.mxu0 0.0
    %661 = vmatpush1.msra.mxu0 0.0
    %662 = vmatprep.subr.mxu0 0.0
    %663 = vmatpush1.msra.mxu0 0.0
    %664 = vmatprep.subr.mxu0 0.0
    %665 = vmatpush1.msra.mxu0 0.0
    %666 = vmatprep.subr.mxu0 0.0
    %667 = vmatpush1.msra.mxu0 0.0
    %668 = vmatprep.subr.mxu0 0.0
    %669 = vmatpush1.msra.mxu0 0.0
    %670 = vmatprep.subr.mxu0 0.0
    %671 = vmatpush1.msra.mxu0 0.0
    %672 = vmatprep.subr.mxu0 0.0
    %673 = vmatpush1.msra.mxu0 0.0
    %674 = vmatprep.subr.mxu0 0.0
    %675 = vmatpush1.msra.mxu0 0.0
    %676 = vmatprep.subr.mxu0 0.0
    %677 = vmatpush1.msra.mxu0 0.0
    %678 = vmatprep.subr.mxu0 0.0
    %679 = vmatpush1.msra.mxu0 0.0
    %680 = vmatprep.subr.mxu0 0.0
    %681 = vmatpush1.msra.mxu0 0.0
    %682 = vmatprep.subr.mxu0 0.0
    %683 = vmatpush1.msra.mxu0 0.0
    %684 = vmatprep.mubr.f32.mxu0 0.0
    %v685 = vand.u32 %v608, 4294901760
    %v686 = vsub.f32 %v608, %v685
    %v687 = vand.u32 %v686, 4294901760
    %v688 = vsub.f32 %v686, %v687
    %v689 = vand.u32 %v688, 4294901760
    %690 = vmatmul.mubr.f32.gmra.mrb[0].mxu0 %v689
    %v691 = vpop.f32.mrb[0].mxu0
    %v692 = vadd.f32 %v38, %v691
    %v693 = vpop.f32.mrb[0].mxu0
    %694 = vmatprep.mubr.f32.mxu0 0.0
    %v695 = vand.u32 %v611, 4294901760
    %v696 = vsub.f32 %v611, %v695
    %v697 = vand.u32 %v696, 4294901760
    %v698 = vsub.f32 %v696, %v697
    %v699 = vand.u32 %v698, 4294901760
    %700 = vmatmul.mubr.f32.gmra.mrb[0].mxu0 %v699
    %v701 = vpop.f32.mrb[0].mxu0
    %v702 = vadd.f32 %v43, %v701
    %v703 = vpop.f32.mrb[0].mxu0
    %704 = vdwg.mxu0
    %705 = vmatprep.subr.mxu0 0.0
    %v706 = vand.u32 %v603, 4294901760
    %v707 = vsub.f32 %v603, %v706
    %v708 = vand.u32 %v707, 4294901760
    %v709 = vsub.f32 %v707, %v708
    %v710 = vand.u32 %v709, 4294901760
    %711 = vmatpush1.msra.mxu0 %v710
    %712 = vmatprep.subr.mxu0 0.0
    %v713 = vand.u32 %v604, 4294901760
    %v714 = vsub.f32 %v604, %v713
    %v715 = vand.u32 %v714, 4294901760
    %v716 = vsub.f32 %v714, %v715
    %v717 = vand.u32 %v716, 4294901760
    %718 = vmatpush1.msra.mxu0 %v717
    %719 = vmatprep.subr.mxu0 0.0
    %v720 = vand.u32 %v615, 4294901760
    %v721 = vsub.f32 %v615, %v720
    %v722 = vand.u32 %v721, 4294901760
    %v723 = vsub.f32 %v721, %v722
    %v724 = vand.u32 %v723, 4294901760
    %725 = vmatpush1.msra.mxu0 %v724
    %726 = vmatprep.subr.mxu0 0.0
    %727 = vmatpush1.msra.mxu0 0.0
    %728 = vmatprep.subr.mxu0 0.0
    %729 = vmatpush1.msra.mxu0 0.0
    %730 = vmatprep.subr.mxu0 0.0
    %731 = vmatpush1.msra.mxu0 0.0
    %732 = vmatprep.subr.mxu0 0.0
    %733 = vmatpush1.msra.mxu0 0.0
    %734 = vmatprep.subr.mxu0 0.0
    %735 = vmatpush1.msra.mxu0 0.0
    %736 = vmatprep.subr.mxu0 0.0
    %737 = vmatpush1.msra.mxu0 0.0
    %738 = vmatprep.subr.mxu0 0.0
    %739 = vmatpush1.msra.mxu0 0.0
    %740 = vmatprep.subr.mxu0 0.0
    %741 = vmatpush1.msra.mxu0 0.0
    %742 = vmatprep.subr.mxu0 0.0
    %743 = vmatpush1.msra.mxu0 0.0
    %744 = vmatprep.subr.mxu0 0.0
    %745 = vmatpush1.msra.mxu0 0.0
    %746 = vmatprep.subr.mxu0 0.0
    %747 = vmatpush1.msra.mxu0 0.0
    %748 = vmatprep.subr.mxu0 0.0
    %749 = vmatpush1.msra.mxu0 0.0
    %750 = vmatprep.subr.mxu0 0.0
    %751 = vmatpush1.msra.mxu0 0.0
    %752 = vmatprep.subr.mxu0 0.0
    %753 = vmatpush1.msra.mxu0 0.0
    %754 = vmatprep.subr.mxu0 0.0
    %755 = vmatpush1.msra.mxu0 0.0
    %756 = vmatprep.subr.mxu0 0.0
    %757 = vmatpush1.msra.mxu0 0.0
    %758 = vmatprep.subr.mxu0 0.0
    %759 = vmatpush1.msra.mxu0 0.0
    %760 = vmatprep.subr.mxu0 0.0
    %761 = vmatpush1.msra.mxu0 0.0
    %762 = vmatprep.subr.mxu0 0.0
    %763 = vmatpush1.msra.mxu0 0.0
    %764 = vmatprep.subr.mxu0 0.0
    %765 = vmatpush1.msra.mxu0 0.0
    %766 = vmatprep.subr.mxu0 0.0
    %767 = vmatpush1.msra.mxu0 0.0
    %768 = vmatprep.subr.mxu0 0.0
    %769 = vmatpush1.msra.mxu0 0.0
    %770 = vmatprep.subr.mxu0 0.0
    %771 = vmatpush1.msra.mxu0 0.0
    %772 = vmatprep.subr.mxu0 0.0
    %773 = vmatpush1.msra.mxu0 0.0
    %774 = vmatprep.subr.mxu0 0.0
    %775 = vmatpush1.msra.mxu0 0.0
    %776 = vmatprep.subr.mxu0 0.0
    %777 = vmatpush1.msra.mxu0 0.0
    %778 = vmatprep.subr.mxu0 0.0
    %779 = vmatpush1.msra.mxu0 0.0
    %780 = vmatprep.subr.mxu0 0.0
    %781 = vmatpush1.msra.mxu0 0.0
    %782 = vmatprep.subr.mxu0 0.0
    %783 = vmatpush1.msra.mxu0 0.0
    %784 = vmatprep.mubr.f32.mxu0 0.0
    %v785 = vand.u32 %v608, 4294901760
    %786 = vmatmul.mubr.f32.gmra.mrb[0].mxu0 %v785
    %v787 = vpop.f32.mrb[0].mxu0
    %v788 = vadd.f32 %v692, %v787
    %v789 = vpop.f32.mrb[0].mxu0
    %790 = vmatprep.mubr.f32.mxu0 0.0
    %v791 = vand.u32 %v611, 4294901760
    %792 = vmatmul.mubr.f32.gmra.mrb[0].mxu0 %v791
    %v793 = vpop.f32.mrb[0].mxu0
    %v794 = vadd.f32 %v702, %v793
    %v795 = vpop.f32.mrb[0].mxu0
    %796 = vdwg.mxu0
    %797 = vmatprep.subr.mxu0 0.0
    %v798 = vand.u32 %v603, 4294901760
    %v799 = vsub.f32 %v603, %v798
    %800 = vmatpush1.msra.mxu0 %v799
    %801 = vmatprep.subr.mxu0 0.0
    %v802 = vand.u32 %v604, 4294901760
    %v803 = vsub.f32 %v604, %v802
    %804 = vmatpush1.msra.mxu0 %v803
    %805 = vmatprep.subr.mxu0 0.0
    %v806 = vand.u32 %v615, 4294901760
    %v807 = vsub.f32 %v615, %v806
    %808 = vmatpush1.msra.mxu0 %v807
    %809 = vmatprep.subr.mxu0 0.0
    %810 = vmatpush1.msra.mxu0 0.0
    %811 = vmatprep.subr.mxu0 0.0
    %812 = vmatpush1.msra.mxu0 0.0
    %813 = vmatprep.subr.mxu0 0.0
    %814 = vmatpush1.msra.mxu0 0.0
    %815 = vmatprep.subr.mxu0 0.0
    %816 = vmatpush1.msra.mxu0 0.0
    %817 = vmatprep.subr.mxu0 0.0
    %818 = vmatpush1.msra.mxu0 0.0
    %819 = vmatprep.subr.mxu0 0.0
    %820 = vmatpush1.msra.mxu0 0.0
    %821 = vmatprep.subr.mxu0 0.0
    %822 = vmatpush1.msra.mxu0 0.0
    %823 = vmatprep.subr.mxu0 0.0
    %824 = vmatpush1.msra.mxu0 0.0
    %825 = vmatprep.subr.mxu0 0.0
    %826 = vmatpush1.msra.mxu0 0.0
    %827 = vmatprep.subr.mxu0 0.0
    %828 = vmatpush1.msra.mxu0 0.0
    %829 = vmatprep.subr.mxu0 0.0
    %830 = vmatpush1.msra.mxu0 0.0
    %831 = vmatprep.subr.mxu0 0.0
    %832 = vmatpush1.msra.mxu0 0.0
    %833 = vmatprep.subr.mxu0 0.0
    %834 = vmatpush1.msra.mxu0 0.0
    %835 = vmatprep.subr.mxu0 0.0
    %836 = vmatpush1.msra.mxu0 0.0
    %837 = vmatprep.subr.mxu0 0.0
    %838 = vmatpush1.msra.mxu0 0.0
    %839 = vmatprep.subr.mxu0 0.0
    %840 = vmatpush1.msra.mxu0 0.0
    %841 = vmatprep.subr.mxu0 0.0
    %842 = vmatpush1.msra.mxu0 0.0
    %843 = vmatprep.subr.mxu0 0.0
    %844 = vmatpush1.msra.mxu0 0.0
    %845 = vmatprep.subr.mxu0 0.0
    %846 = vmatpush1.msra.mxu0 0.0
    %847 = vmatprep.subr.mxu0 0.0
    %848 = vmatpush1.msra.mxu0 0.0
    %849 = vmatprep.subr.mxu0 0.0
    %850 = vmatpush1.msra.mxu0 0.0
    %851 = vmatprep.subr.mxu0 0.0
    %852 = vmatpush1.msra.mxu0 0.0
    %853 = vmatprep.subr.mxu0 0.0
    %854 = vmatpush1.msra.mxu0 0.0
    %855 = vmatprep.subr.mxu0 0.0
    %856 = vmatpush1.msra.mxu0 0.0
    %857 = vmatprep.subr.mxu0 0.0
    %858 = vmatpush1.msra.mxu0 0.0
    %859 = vmatprep.subr.mxu0 0.0
    %860 = vmatpush1.msra.mxu0 0.0
    %861 = vmatprep.subr.mxu0 0.0
    %862 = vmatpush1.msra.mxu0 0.0
    %863 = vmatprep.subr.mxu0 0.0
    %864 = vmatpush1.msra.mxu0 0.0
    %865 = vmatprep.subr.mxu0 0.0
    %866 = vmatpush1.msra.mxu0 0.0
    %867 = vmatprep.mubr.f32.mxu0 0.0
    %v868 = vand.u32 %v608, 4294901760
    %v869 = vsub.f32 %v608, %v868
    %870 = vmatmul.mubr.f32.gmra.mrb[0].mxu0 %v869
    %v871 = vpop.f32.mrb[0].mxu0
    %v872 = vadd.f32 %v788, %v871
    %v873 = vpop.f32.mrb[0].mxu0
    %874 = vmatprep.mubr.f32.mxu0 0.0
    %v875 = vand.u32 %v611, 4294901760
    %v876 = vsub.f32 %v611, %v875
    %877 = vmatmul.mubr.f32.gmra.mrb[0].mxu0 %v876
    %v878 = vpop.f32.mrb[0].mxu0
    %v879 = vadd.f32 %v794, %v878
    %v880 = vpop.f32.mrb[0].mxu0
    %881 = vdwg.mxu0
    %882 = vmatprep.subr.mxu0 0.0
    %v883 = vand.u32 %v603, 4294901760
    %884 = vmatpush1.msra.mxu0 %v883
    %885 = vmatprep.subr.mxu0 0.0
    %v886 = vand.u32 %v604, 4294901760
    %887 = vmatpush1.msra.mxu0 %v886
    %888 = vmatprep.subr.mxu0 0.0
    %v889 = vand.u32 %v615, 4294901760
    %890 = vmatpush1.msra.mxu0 %v889
    %891 = vmatprep.subr.mxu0 0.0
    %892 = vmatpush1.msra.mxu0 0.0
    %893 = vmatprep.subr.mxu0 0.0
    %894 = vmatpush1.msra.mxu0 0.0
    %895 = vmatprep.subr.mxu0 0.0
    %896 = vmatpush1.msra.mxu0 0.0
    %897 = vmatprep.subr.mxu0 0.0
    %898 = vmatpush1.msra.mxu0 0.0
    %899 = vmatprep.subr.mxu0 0.0
    %900 = vmatpush1.msra.mxu0 0.0
    %901 = vmatprep.subr.mxu0 0.0
    %902 = vmatpush1.msra.mxu0 0.0
    %903 = vmatprep.subr.mxu0 0.0
    %904 = vmatpush1.msra.mxu0 0.0
    %905 = vmatprep.subr.mxu0 0.0
    %906 = vmatpush1.msra.mxu0 0.0
    %907 = vmatprep.subr.mxu0 0.0
    %908 = vmatpush1.msra.mxu0 0.0
    %909 = vmatprep.subr.mxu0 0.0
    %910 = vmatpush1.msra.mxu0 0.0
    %911 = vmatprep.subr.mxu0 0.0
    %912 = vmatpush1.msra.mxu0 0.0
    %913 = vmatprep.subr.mxu0 0.0
    %914 = vmatpush1.msra.mxu0 0.0
    %915 = vmatprep.subr.mxu0 0.0
    %916 = vmatpush1.msra.mxu0 0.0
    %917 = vmatprep.subr.mxu0 0.0
    %918 = vmatpush1.msra.mxu0 0.0
    %919 = vmatprep.subr.mxu0 0.0
    %920 = vmatpush1.msra.mxu0 0.0
    %921 = vmatprep.subr.mxu0 0.0
    %922 = vmatpush1.msra.mxu0 0.0
    %923 = vmatprep.subr.mxu0 0.0
    %924 = vmatpush1.msra.mxu0 0.0
    %925 = vmatprep.subr.mxu0 0.0
    %926 = vmatpush1.msra.mxu0 0.0
    %927 = vmatprep.subr.mxu0 0.0
    %928 = vmatpush1.msra.mxu0 0.0
    %929 = vmatprep.subr.mxu0 0.0
    %930 = vmatpush1.msra.mxu0 0.0
    %931 = vmatprep.subr.mxu0 0.0
    %932 = vmatpush1.msra.mxu0 0.0
    %933 = vmatprep.subr.mxu0 0.0
    %934 = vmatpush1.msra.mxu0 0.0
    %935 = vmatprep.subr.mxu0 0.0
    %936 = vmatpush1.msra.mxu0 0.0
    %937 = vmatprep.subr.mxu0 0.0
    %938 = vmatpush1.msra.mxu0 0.0
    %939 = vmatprep.subr.mxu0 0.0
    %940 = vmatpush1.msra.mxu0 0.0
    %941 = vmatprep.subr.mxu0 0.0
    %942 = vmatpush1.msra.mxu0 0.0
    %943 = vmatprep.subr.mxu0 0.0
    %944 = vmatpush1.msra.mxu0 0.0
    %945 = vmatprep.subr.mxu0 0.0
    %946 = vmatpush1.msra.mxu0 0.0
    %947 = vmatprep.subr.mxu0 0.0
    %948 = vmatpush1.msra.mxu0 0.0
    %949 = vmatprep.mubr.f32.mxu0 0.0
    %v950 = vand.u32 %v608, 4294901760
    %v951 = vsub.f32 %v608, %v950
    %v952 = vand.u32 %v951, 4294901760
    %953 = vmatmul.mubr.f32.gmra.mrb[0].mxu0 %v952
    %v954 = vpop.f32.mrb[0].mxu0
    %v955 = vadd.f32 %v872, %v954
    %v956 = vpop.f32.mrb[0].mxu0
    %957 = vmatprep.mubr.f32.mxu0 0.0
    %v958 = vand.u32 %v611, 4294901760
    %v959 = vsub.f32 %v611, %v958
    %v960 = vand.u32 %v959, 4294901760
    %961 = vmatmul.mubr.f32.gmra.mrb[0].mxu0 %v960
    %v962 = vpop.f32.mrb[0].mxu0
    %v963 = vadd.f32 %v879, %v962
    %v964 = vpop.f32.mrb[0].mxu0
    %965 = vdwg.mxu0
    %966 = vmatprep.subr.mxu0 0.0
    %v967 = vand.u32 %v603, 4294901760
    %v968 = vsub.f32 %v603, %v967
    %v969 = vand.u32 %v968, 4294901760
    %970 = vmatpush1.msra.mxu0 %v969
    %971 = vmatprep.subr.mxu0 0.0
    %v972 = vand.u32 %v604, 4294901760
    %v973 = vsub.f32 %v604, %v972
    %v974 = vand.u32 %v973, 4294901760
    %975 = vmatpush1.msra.mxu0 %v974
    %976 = vmatprep.subr.mxu0 0.0
    %v977 = vand.u32 %v615, 4294901760
    %v978 = vsub.f32 %v615, %v977
    %v979 = vand.u32 %v978, 4294901760
    %980 = vmatpush1.msra.mxu0 %v979
    %981 = vmatprep.subr.mxu0 0.0
    %982 = vmatpush1.msra.mxu0 0.0
    %983 = vmatprep.subr.mxu0 0.0
    %984 = vmatpush1.msra.mxu0 0.0
    %985 = vmatprep.subr.mxu0 0.0
    %986 = vmatpush1.msra.mxu0 0.0
    %987 = vmatprep.subr.mxu0 0.0
    %988 = vmatpush1.msra.mxu0 0.0
    %989 = vmatprep.subr.mxu0 0.0
    %990 = vmatpush1.msra.mxu0 0.0
    %991 = vmatprep.subr.mxu0 0.0
    %992 = vmatpush1.msra.mxu0 0.0
    %993 = vmatprep.subr.mxu0 0.0
    %994 = vmatpush1.msra.mxu0 0.0
    %995 = vmatprep.subr.mxu0 0.0
    %996 = vmatpush1.msra.mxu0 0.0
    %997 = vmatprep.subr.mxu0 0.0
    %998 = vmatpush1.msra.mxu0 0.0
    %999 = vmatprep.subr.mxu0 0.0
    %1000 = vmatpush1.msra.mxu0 0.0
    %1001 = vmatprep.subr.mxu0 0.0
    %1002 = vmatpush1.msra.mxu0 0.0
    %1003 = vmatprep.subr.mxu0 0.0
    %1004 = vmatpush1.msra.mxu0 0.0
    %1005 = vmatprep.subr.mxu0 0.0
    %1006 = vmatpush1.msra.mxu0 0.0
    %1007 = vmatprep.subr.mxu0 0.0
    %1008 = vmatpush1.msra.mxu0 0.0
    %1009 = vmatprep.subr.mxu0 0.0
    %1010 = vmatpush1.msra.mxu0 0.0
    %1011 = vmatprep.subr.mxu0 0.0
    %1012 = vmatpush1.msra.mxu0 0.0
    %1013 = vmatprep.subr.mxu0 0.0
    %1014 = vmatpush1.msra.mxu0 0.0
    %1015 = vmatprep.subr.mxu0 0.0
    %1016 = vmatpush1.msra.mxu0 0.0
    %1017 = vmatprep.subr.mxu0 0.0
    %1018 = vmatpush1.msra.mxu0 0.0
    %1019 = vmatprep.subr.mxu0 0.0
    %1020 = vmatpush1.msra.mxu0 0.0
    %1021 = vmatprep.subr.mxu0 0.0
    %1022 = vmatpush1.msra.mxu0 0.0
    %1023 = vmatprep.subr.mxu0 0.0
    %1024 = vmatpush1.msra.mxu0 0.0
    %1025 = vmatprep.subr.mxu0 0.0
    %1026 = vmatpush1.msra.mxu0 0.0
    %1027 = vmatprep.subr.mxu0 0.0
    %1028 = vmatpush1.msra.mxu0 0.0
    %1029 = vmatprep.subr.mxu0 0.0
    %1030 = vmatpush1.msra.mxu0 0.0
    %1031 = vmatprep.subr.mxu0 0.0
    %1032 = vmatpush1.msra.mxu0 0.0
    %1033 = vmatprep.subr.mxu0 0.0
    %1034 = vmatpush1.msra.mxu0 0.0
    %1035 = vmatprep.subr.mxu0 0.0
    %1036 = vmatpush1.msra.mxu0 0.0
    %1037 = vmatprep.subr.mxu0 0.0
    %1038 = vmatpush1.msra.mxu0 0.0
    %1039 = vmatprep.mubr.f32.mxu0 0.0
    %v1040 = vand.u32 %v608, 4294901760
    %1041 = vmatmul.mubr.f32.gmra.mrb[0].mxu0 %v1040
    %v1042 = vpop.f32.mrb[0].mxu0
    %v1043 = vadd.f32 %v955, %v1042
    %v1044 = vpop.f32.mrb[0].mxu0
    %1045 = vmatprep.mubr.f32.mxu0 0.0
    %v1046 = vand.u32 %v611, 4294901760
    %1047 = vmatmul.mubr.f32.gmra.mrb[0].mxu0 %v1046
    %v1048 = vpop.f32.mrb[0].mxu0
    %v1049 = vadd.f32 %v963, %v1048
    %v1050 = vpop.f32.mrb[0].mxu0
    %1051 = vdwg.mxu0
    %1052 = vmatprep.subr.mxu0 0.0
    %v1053 = vand.u32 %v603, 4294901760
    %1054 = vmatpush1.msra.mxu0 %v1053
    %1055 = vmatprep.subr.mxu0 0.0
    %v1056 = vand.u32 %v604, 4294901760
    %1057 = vmatpush1.msra.mxu0 %v1056
    %1058 = vmatprep.subr.mxu0 0.0
    %v1059 = vand.u32 %v615, 4294901760
    %1060 = vmatpush1.msra.mxu0 %v1059
    %1061 = vmatprep.subr.mxu0 0.0
    %1062 = vmatpush1.msra.mxu0 0.0
    %1063 = vmatprep.subr.mxu0 0.0
    %1064 = vmatpush1.msra.mxu0 0.0
    %1065 = vmatprep.subr.mxu0 0.0
    %1066 = vmatpush1.msra.mxu0 0.0
    %1067 = vmatprep.subr.mxu0 0.0
    %1068 = vmatpush1.msra.mxu0 0.0
    %1069 = vmatprep.subr.mxu0 0.0
    %1070 = vmatpush1.msra.mxu0 0.0
    %1071 = vmatprep.subr.mxu0 0.0
    %1072 = vmatpush1.msra.mxu0 0.0
    %1073 = vmatprep.subr.mxu0 0.0
    %1074 = vmatpush1.msra.mxu0 0.0
    %1075 = vmatprep.subr.mxu0 0.0
    %1076 = vmatpush1.msra.mxu0 0.0
    %1077 = vmatprep.subr.mxu0 0.0
    %1078 = vmatpush1.msra.mxu0 0.0
    %1079 = vmatprep.subr.mxu0 0.0
    %1080 = vmatpush1.msra.mxu0 0.0
    %1081 = vmatprep.subr.mxu0 0.0
    %1082 = vmatpush1.msra.mxu0 0.0
    %1083 = vmatprep.subr.mxu0 0.0
    %1084 = vmatpush1.msra.mxu0 0.0
    %1085 = vmatprep.subr.mxu0 0.0
    %1086 = vmatpush1.msra.mxu0 0.0
    %1087 = vmatprep.subr.mxu0 0.0
    %1088 = vmatpush1.msra.mxu0 0.0
    %1089 = vmatprep.subr.mxu0 0.0
    %1090 = vmatpush1.msra.mxu0 0.0
    %1091 = vmatprep.subr.mxu0 0.0
    %1092 = vmatpush1.msra.mxu0 0.0
    %1093 = vmatprep.subr.mxu0 0.0
    %1094 = vmatpush1.msra.mxu0 0.0
    %1095 = vmatprep.subr.mxu0 0.0
    %1096 = vmatpush1.msra.mxu0 0.0
    %1097 = vmatprep.subr.mxu0 0.0
    %1098 = vmatpush1.msra.mxu0 0.0
    %1099 = vmatprep.subr.mxu0 0.0
    %1100 = vmatpush1.msra.mxu0 0.0
    %1101 = vmatprep.subr.mxu0 0.0
    %1102 = vmatpush1.msra.mxu0 0.0
    %1103 = vmatprep.subr.mxu0 0.0
    %1104 = vmatpush1.msra.mxu0 0.0
    %1105 = vmatprep.subr.mxu0 0.0
    %1106 = vmatpush1.msra.mxu0 0.0
    %1107 = vmatprep.subr.mxu0 0.0
    %1108 = vmatpush1.msra.mxu0 0.0
    %1109 = vmatprep.subr.mxu0 0.0
    %1110 = vmatpush1.msra.mxu0 0.0
    %1111 = vmatprep.subr.mxu0 0.0
    %1112 = vmatpush1.msra.mxu0 0.0
    %1113 = vmatprep.subr.mxu0 0.0
    %1114 = vmatpush1.msra.mxu0 0.0
    %1115 = vmatprep.subr.mxu0 0.0
    %1116 = vmatpush1.msra.mxu0 0.0
    %1117 = vmatprep.subr.mxu0 0.0
    %1118 = vmatpush1.msra.mxu0 0.0
    %1119 = vmatprep.mubr.f32.mxu0 0.0
    %v1120 = vand.u32 %v608, 4294901760
    %1121 = vmatmul.mubr.f32.gmra.mrb[0].mxu0 %v1120
    %v1122 = vpop.f32.mrb[0].mxu0
    %v1123 = vadd.f32 %v1043, %v1122
    %v1124 = vpop.f32.mrb[0].mxu0
    %1125 = vmatprep.mubr.f32.mxu0 0.0
    %v1126 = vand.u32 %v611, 4294901760
    %1127 = vmatmul.mubr.f32.gmra.mrb[0].mxu0 %v1126
    %v1128 = vpop.f32.mrb[0].mxu0
    %v1129 = vadd.f32 %v1049, %v1128
    %v1130 = vpop.f32.mrb[0].mxu0
    %1131 = vdwg.mxu0
    %v1132 = vmax.f32 %v1123, 0.0
    %v1133 = vmax.f32 %v1129, 0.0
    %vm1134 = vcmask 80896
    %v1136 = vsel %vm1134, %v33, 0
    %v1139 = vsel %vm67, %v1133, 0
    %1141 = vmatprep.subr.mxu0 0.0
    %v1142 = vand.u32 %v1132, 4294901760
    %1143 = vmatpush1.msra.mxu0 %v1142
    %1144 = vmatprep.subr.mxu0 0.0
    %v1145 = vand.u32 %v1139, 4294901760
    %1146 = vmatpush1.msra.mxu0 %v1145
    %1147 = vmatprep.subr.mxu0 0.0
    %1148 = vmatpush1.msra.mxu0 0.0
    %1149 = vmatprep.subr.mxu0 0.0
    %1150 = vmatpush1.msra.mxu0 0.0
    %1151 = vmatprep.subr.mxu0 0.0
    %1152 = vmatpush1.msra.mxu0 0.0
    %1153 = vmatprep.subr.mxu0 0.0
    %1154 = vmatpush1.msra.mxu0 0.0
    %1155 = vmatprep.subr.mxu0 0.0
    %1156 = vmatpush1.msra.mxu0 0.0
    %1157 = vmatprep.subr.mxu0 0.0
    %1158 = vmatpush1.msra.mxu0 0.0
    %1159 = vmatprep.subr.mxu0 0.0
    %1160 = vmatpush1.msra.mxu0 0.0
    %1161 = vmatprep.subr.mxu0 0.0
    %1162 = vmatpush1.msra.mxu0 0.0
    %1163 = vmatprep.subr.mxu0 0.0
    %1164 = vmatpush1.msra.mxu0 0.0
    %1165 = vmatprep.subr.mxu0 0.0
    %1166 = vmatpush1.msra.mxu0 0.0
    %1167 = vmatprep.subr.mxu0 0.0
    %1168 = vmatpush1.msra.mxu0 0.0
    %1169 = vmatprep.subr.mxu0 0.0
    %1170 = vmatpush1.msra.mxu0 0.0
    %1171 = vmatprep.subr.mxu0 0.0
    %1172 = vmatpush1.msra.mxu0 0.0
    %1173 = vmatprep.subr.mxu0 0.0
    %1174 = vmatpush1.msra.mxu0 0.0
    %1175 = vmatprep.subr.mxu0 0.0
    %1176 = vmatpush1.msra.mxu0 0.0
    %1177 = vmatprep.subr.mxu0 0.0
    %1178 = vmatpush1.msra.mxu0 0.0
    %1179 = vmatprep.subr.mxu0 0.0
    %1180 = vmatpush1.msra.mxu0 0.0
    %1181 = vmatprep.subr.mxu0 0.0
    %1182 = vmatpush1.msra.mxu0 0.0
    %1183 = vmatprep.subr.mxu0 0.0
    %1184 = vmatpush1.msra.mxu0 0.0
    %1185 = vmatprep.subr.mxu0 0.0
    %1186 = vmatpush1.msra.mxu0 0.0
    %1187 = vmatprep.subr.mxu0 0.0
    %1188 = vmatpush1.msra.mxu0 0.0
    %1189 = vmatprep.subr.mxu0 0.0
    %1190 = vmatpush1.msra.mxu0 0.0
    %1191 = vmatprep.subr.mxu0 0.0
    %1192 = vmatpush1.msra.mxu0 0.0
    %1193 = vmatprep.subr.mxu0 0.0
    %1194 = vmatpush1.msra.mxu0 0.0
    %1195 = vmatprep.subr.mxu0 0.0
    %1196 = vmatpush1.msra.mxu0 0.0
    %1197 = vmatprep.subr.mxu0 0.0
    %1198 = vmatpush1.msra.mxu0 0.0
    %1199 = vmatprep.subr.mxu0 0.0
    %1200 = vmatpush1.msra.mxu0 0.0
    %1201 = vmatprep.subr.mxu0 0.0
    %1202 = vmatpush1.msra.mxu0 0.0
    %1203 = vmatprep.subr.mxu0 0.0
    %1204 = vmatpush1.msra.mxu0 0.0
    %1205 = vmatprep.subr.mxu0 0.0
    %1206 = vmatpush1.msra.mxu0 0.0
    %1207 = vmatprep.mubr.f32.mxu0 0.0
    %v1208 = vand.u32 %v1136, 4294901760
    %v1209 = vsub.f32 %v1136, %v1208
    %v1210 = vand.u32 %v1209, 4294901760
    %v1211 = vsub.f32 %v1209, %v1210
    %v1212 = vand.u32 %v1211, 4294901760
    %1213 = vmatmul.mubr.f32.gmra.mrb[0].mxu0 %v1212
    %v1214 = vpop.f32.mrb[0].mxu0
    %v1215 = vadd.f32 %v53, %v1214
    %v1216 = vpop.f32.mrb[0].mxu0
    %1217 = vdwg.mxu0
    %1218 = vmatprep.subr.mxu0 0.0
    %v1219 = vand.u32 %v1132, 4294901760
    %v1220 = vsub.f32 %v1132, %v1219
    %v1221 = vand.u32 %v1220, 4294901760
    %v1222 = vsub.f32 %v1220, %v1221
    %v1223 = vand.u32 %v1222, 4294901760
    %1224 = vmatpush1.msra.mxu0 %v1223
    %1225 = vmatprep.subr.mxu0 0.0
    %v1226 = vand.u32 %v1139, 4294901760
    %v1227 = vsub.f32 %v1139, %v1226
    %v1228 = vand.u32 %v1227, 4294901760
    %v1229 = vsub.f32 %v1227, %v1228
    %v1230 = vand.u32 %v1229, 4294901760
    %1231 = vmatpush1.msra.mxu0 %v1230
    %1232 = vmatprep.subr.mxu0 0.0
    %1233 = vmatpush1.msra.mxu0 0.0
    %1234 = vmatprep.subr.mxu0 0.0
    %1235 = vmatpush1.msra.mxu0 0.0
    %1236 = vmatprep.subr.mxu0 0.0
    %1237 = vmatpush1.msra.mxu0 0.0
    %1238 = vmatprep.subr.mxu0 0.0
    %1239 = vmatpush1.msra.mxu0 0.0
    %1240 = vmatprep.subr.mxu0 0.0
    %1241 = vmatpush1.msra.mxu0 0.0
    %1242 = vmatprep.subr.mxu0 0.0
    %1243 = vmatpush1.msra.mxu0 0.0
    %1244 = vmatprep.subr.mxu0 0.0
    %1245 = vmatpush1.msra.mxu0 0.0
    %1246 = vmatprep.subr.mxu0 0.0
    %1247 = vmatpush1.msra.mxu0 0.0
    %1248 = vmatprep.subr.mxu0 0.0
    %1249 = vmatpush1.msra.mxu0 0.0
    %1250 = vmatprep.subr.mxu0 0.0
    %1251 = vmatpush1.msra.mxu0 0.0
    %1252 = vmatprep.subr.mxu0 0.0
    %1253 = vmatpush1.msra.mxu0 0.0
    %1254 = vmatprep.subr.mxu0 0.0
    %1255 = vmatpush1.msra.mxu0 0.0
    %1256 = vmatprep.subr.mxu0 0.0
    %1257 = vmatpush1.msra.mxu0 0.0
    %1258 = vmatprep.subr.mxu0 0.0
    %1259 = vmatpush1.msra.mxu0 0.0
    %1260 = vmatprep.subr.mxu0 0.0
    %1261 = vmatpush1.msra.mxu0 0.0
    %1262 = vmatprep.subr.mxu0 0.0
    %1263 = vmatpush1.msra.mxu0 0.0
    %1264 = vmatprep.subr.mxu0 0.0
    %1265 = vmatpush1.msra.mxu0 0.0
    %1266 = vmatprep.subr.mxu0 0.0
    %1267 = vmatpush1.msra.mxu0 0.0
    %1268 = vmatprep.subr.mxu0 0.0
    %1269 = vmatpush1.msra.mxu0 0.0
    %1270 = vmatprep.subr.mxu0 0.0
    %1271 = vmatpush1.msra.mxu0 0.0
    %1272 = vmatprep.subr.mxu0 0.0
    %1273 = vmatpush1.msra.mxu0 0.0
    %1274 = vmatprep.subr.mxu0 0.0
    %1275 = vmatpush1.msra.mxu0 0.0
    %1276 = vmatprep.subr.mxu0 0.0
    %1277 = vmatpush1.msra.mxu0 0.0
    %1278 = vmatprep.subr.mxu0 0.0
    %1279 = vmatpush1.msra.mxu0 0.0
    %1280 = vmatprep.subr.mxu0 0.0
    %1281 = vmatpush1.msra.mxu0 0.0
    %1282 = vmatprep.subr.mxu0 0.0
    %1283 = vmatpush1.msra.mxu0 0.0
    %1284 = vmatprep.subr.mxu0 0.0
    %1285 = vmatpush1.msra.mxu0 0.0
    %1286 = vmatprep.subr.mxu0 0.0
    %1287 = vmatpush1.msra.mxu0 0.0
    %1288 = vmatprep.subr.mxu0 0.0
    %1289 = vmatpush1.msra.mxu0 0.0
    %1290 = vmatprep.subr.mxu0 0.0
    %1291 = vmatpush1.msra.mxu0 0.0
    %1292 = vmatprep.mubr.f32.mxu0 0.0
    %v1293 = vand.u32 %v1136, 4294901760
    %1294 = vmatmul.mubr.f32.gmra.mrb[0].mxu0 %v1293
    %v1295 = vpop.f32.mrb[0].mxu0
    %v1296 = vadd.f32 %v1215, %v1295
    %v1297 = vpop.f32.mrb[0].mxu0
    %1298 = vdwg.mxu0
    %1299 = vmatprep.subr.mxu0 0.0
    %v1300 = vand.u32 %v1132, 4294901760
    %v1301 = vsub.f32 %v1132, %v1300
    %1302 = vmatpush1.msra.mxu0 %v1301
    %1303 = vmatprep.subr.mxu0 0.0
    %v1304 = vand.u32 %v1139, 4294901760
    %v1305 = vsub.f32 %v1139, %v1304
    %1306 = vmatpush1.msra.mxu0 %v1305
    %1307 = vmatprep.subr.mxu0 0.0
    %1308 = vmatpush1.msra.mxu0 0.0
    %1309 = vmatprep.subr.mxu0 0.0
    %1310 = vmatpush1.msra.mxu0 0.0
    %1311 = vmatprep.subr.mxu0 0.0
    %1312 = vmatpush1.msra.mxu0 0.0
    %1313 = vmatprep.subr.mxu0 0.0
    %1314 = vmatpush1.msra.mxu0 0.0
    %1315 = vmatprep.subr.mxu0 0.0
    %1316 = vmatpush1.msra.mxu0 0.0
    %1317 = vmatprep.subr.mxu0 0.0
    %1318 = vmatpush1.msra.mxu0 0.0
    %1319 = vmatprep.subr.mxu0 0.0
    %1320 = vmatpush1.msra.mxu0 0.0
    %1321 = vmatprep.subr.mxu0 0.0
    %1322 = vmatpush1.msra.mxu0 0.0
    %1323 = vmatprep.subr.mxu0 0.0
    %1324 = vmatpush1.msra.mxu0 0.0
    %1325 = vmatprep.subr.mxu0 0.0
    %1326 = vmatpush1.msra.mxu0 0.0
    %1327 = vmatprep.subr.mxu0 0.0
    %1328 = vmatpush1.msra.mxu0 0.0
    %1329 = vmatprep.subr.mxu0 0.0
    %1330 = vmatpush1.msra.mxu0 0.0
    %1331 = vmatprep.subr.mxu0 0.0
    %1332 = vmatpush1.msra.mxu0 0.0
    %1333 = vmatprep.subr.mxu0 0.0
    %1334 = vmatpush1.msra.mxu0 0.0
    %1335 = vmatprep.subr.mxu0 0.0
    %1336 = vmatpush1.msra.mxu0 0.0
    %1337 = vmatprep.subr.mxu0 0.0
    %1338 = vmatpush1.msra.mxu0 0.0
    %1339 = vmatprep.subr.mxu0 0.0
    %1340 = vmatpush1.msra.mxu0 0.0
    %1341 = vmatprep.subr.mxu0 0.0
    %1342 = vmatpush1.msra.mxu0 0.0
    %1343 = vmatprep.subr.mxu0 0.0
    %1344 = vmatpush1.msra.mxu0 0.0
    %1345 = vmatprep.subr.mxu0 0.0
    %1346 = vmatpush1.msra.mxu0 0.0
    %1347 = vmatprep.subr.mxu0 0.0
    %1348 = vmatpush1.msra.mxu0 0.0
    %1349 = vmatprep.subr.mxu0 0.0
    %1350 = vmatpush1.msra.mxu0 0.0
    %1351 = vmatprep.subr.mxu0 0.0
    %1352 = vmatpush1.msra.mxu0 0.0
    %1353 = vmatprep.subr.mxu0 0.0
    %1354 = vmatpush1.msra.mxu0 0.0
    %1355 = vmatprep.subr.mxu0 0.0
    %1356 = vmatpush1.msra.mxu0 0.0
    %1357 = vmatprep.subr.mxu0 0.0
    %1358 = vmatpush1.msra.mxu0 0.0
    %1359 = vmatprep.subr.mxu0 0.0
    %1360 = vmatpush1.msra.mxu0 0.0
    %1361 = vmatprep.subr.mxu0 0.0
    %1362 = vmatpush1.msra.mxu0 0.0
    %1363 = vmatprep.subr.mxu0 0.0
    %1364 = vmatpush1.msra.mxu0 0.0
    %1365 = vmatprep.subr.mxu0 0.0
    %1366 = vmatpush1.msra.mxu0 0.0
    %1367 = vmatprep.mubr.f32.mxu0 0.0
    %v1368 = vand.u32 %v1136, 4294901760
    %v1369 = vsub.f32 %v1136, %v1368
    %1370 = vmatmul.mubr.f32.gmra.mrb[0].mxu0 %v1369
    %v1371 = vpop.f32.mrb[0].mxu0
    %v1372 = vadd.f32 %v1296, %v1371
    %v1373 = vpop.f32.mrb[0].mxu0
    %1374 = vdwg.mxu0
    %1375 = vmatprep.subr.mxu0 0.0
    %v1376 = vand.u32 %v1132, 4294901760
    %1377 = vmatpush1.msra.mxu0 %v1376
    %1378 = vmatprep.subr.mxu0 0.0
    %v1379 = vand.u32 %v1139, 4294901760
    %1380 = vmatpush1.msra.mxu0 %v1379
    %1381 = vmatprep.subr.mxu0 0.0
    %1382 = vmatpush1.msra.mxu0 0.0
    %1383 = vmatprep.subr.mxu0 0.0
    %1384 = vmatpush1.msra.mxu0 0.0
    %1385 = vmatprep.subr.mxu0 0.0
    %1386 = vmatpush1.msra.mxu0 0.0
    %1387 = vmatprep.subr.mxu0 0.0
    %1388 = vmatpush1.msra.mxu0 0.0
    %1389 = vmatprep.subr.mxu0 0.0
    %1390 = vmatpush1.msra.mxu0 0.0
    %1391 = vmatprep.subr.mxu0 0.0
    %1392 = vmatpush1.msra.mxu0 0.0
    %1393 = vmatprep.subr.mxu0 0.0
    %1394 = vmatpush1.msra.mxu0 0.0
    %1395 = vmatprep.subr.mxu0 0.0
    %1396 = vmatpush1.msra.mxu0 0.0
    %1397 = vmatprep.subr.mxu0 0.0
    %1398 = vmatpush1.msra.mxu0 0.0
    %1399 = vmatprep.subr.mxu0 0.0
    %1400 = vmatpush1.msra.mxu0 0.0
    %1401 = vmatprep.subr.mxu0 0.0
    %1402 = vmatpush1.msra.mxu0 0.0
    %1403 = vmatprep.subr.mxu0 0.0
    %1404 = vmatpush1.msra.mxu0 0.0
    %1405 = vmatprep.subr.mxu0 0.0
    %1406 = vmatpush1.msra.mxu0 0.0
    %1407 = vmatprep.subr.mxu0 0.0
    %1408 = vmatpush1.msra.mxu0 0.0
    %1409 = vmatprep.subr.mxu0 0.0
    %1410 = vmatpush1.msra.mxu0 0.0
    %1411 = vmatprep.subr.mxu0 0.0
    %1412 = vmatpush1.msra.mxu0 0.0
    %1413 = vmatprep.subr.mxu0 0.0
    %1414 = vmatpush1.msra.mxu0 0.0
    %1415 = vmatprep.subr.mxu0 0.0
    %1416 = vmatpush1.msra.mxu0 0.0
    %1417 = vmatprep.subr.mxu0 0.0
    %1418 = vmatpush1.msra.mxu0 0.0
    %1419 = vmatprep.subr.mxu0 0.0
    %1420 = vmatpush1.msra.mxu0 0.0
    %1421 = vmatprep.subr.mxu0 0.0
    %1422 = vmatpush1.msra.mxu0 0.0
    %1423 = vmatprep.subr.mxu0 0.0
    %1424 = vmatpush1.msra.mxu0 0.0
    %1425 = vmatprep.subr.mxu0 0.0
    %1426 = vmatpush1.msra.mxu0 0.0
    %1427 = vmatprep.subr.mxu0 0.0
    %1428 = vmatpush1.msra.mxu0 0.0
    %1429 = vmatprep.subr.mxu0 0.0
    %1430 = vmatpush1.msra.mxu0 0.0
    %1431 = vmatprep.subr.mxu0 0.0
    %1432 = vmatpush1.msra.mxu0 0.0
    %1433 = vmatprep.subr.mxu0 0.0
    %1434 = vmatpush1.msra.mxu0 0.0
    %1435 = vmatprep.subr.mxu0 0.0
    %1436 = vmatpush1.msra.mxu0 0.0
    %1437 = vmatprep.subr.mxu0 0.0
    %1438 = vmatpush1.msra.mxu0 0.0
    %1439 = vmatprep.subr.mxu0 0.0
    %1440 = vmatpush1.msra.mxu0 0.0
    %1441 = vmatprep.mubr.f32.mxu0 0.0
    %v1442 = vand.u32 %v1136, 4294901760
    %v1443 = vsub.f32 %v1136, %v1442
    %v1444 = vand.u32 %v1443, 4294901760
    %1445 = vmatmul.mubr.f32.gmra.mrb[0].mxu0 %v1444
    %v1446 = vpop.f32.mrb[0].mxu0
    %v1447 = vadd.f32 %v1372, %v1446
    %v1448 = vpop.f32.mrb[0].mxu0
    %1449 = vdwg.mxu0
    %1450 = vmatprep.subr.mxu0 0.0
    %v1451 = vand.u32 %v1132, 4294901760
    %v1452 = vsub.f32 %v1132, %v1451
    %v1453 = vand.u32 %v1452, 4294901760
    %1454 = vmatpush1.msra.mxu0 %v1453
    %1455 = vmatprep.subr.mxu0 0.0
    %v1456 = vand.u32 %v1139, 4294901760
    %v1457 = vsub.f32 %v1139, %v1456
    %v1458 = vand.u32 %v1457, 4294901760
    %1459 = vmatpush1.msra.mxu0 %v1458
    %1460 = vmatprep.subr.mxu0 0.0
    %1461 = vmatpush1.msra.mxu0 0.0
    %1462 = vmatprep.subr.mxu0 0.0
    %1463 = vmatpush1.msra.mxu0 0.0
    %1464 = vmatprep.subr.mxu0 0.0
    %1465 = vmatpush1.msra.mxu0 0.0
    %1466 = vmatprep.subr.mxu0 0.0
    %1467 = vmatpush1.msra.mxu0 0.0
    %1468 = vmatprep.subr.mxu0 0.0
    %1469 = vmatpush1.msra.mxu0 0.0
    %1470 = vmatprep.subr.mxu0 0.0
    %1471 = vmatpush1.msra.mxu0 0.0
    %1472 = vmatprep.subr.mxu0 0.0
    %1473 = vmatpush1.msra.mxu0 0.0
    %1474 = vmatprep.subr.mxu0 0.0
    %1475 = vmatpush1.msra.mxu0 0.0
    %1476 = vmatprep.subr.mxu0 0.0
    %1477 = vmatpush1.msra.mxu0 0.0
    %1478 = vmatprep.subr.mxu0 0.0
    %1479 = vmatpush1.msra.mxu0 0.0
    %1480 = vmatprep.subr.mxu0 0.0
    %1481 = vmatpush1.msra.mxu0 0.0
    %1482 = vmatprep.subr.mxu0 0.0
    %1483 = vmatpush1.msra.mxu0 0.0
    %1484 = vmatprep.subr.mxu0 0.0
    %1485 = vmatpush1.msra.mxu0 0.0
    %1486 = vmatprep.subr.mxu0 0.0
    %1487 = vmatpush1.msra.mxu0 0.0
    %1488 = vmatprep.subr.mxu0 0.0
    %1489 = vmatpush1.msra.mxu0 0.0
    %1490 = vmatprep.subr.mxu0 0.0
    %1491 = vmatpush1.msra.mxu0 0.0
    %1492 = vmatprep.subr.mxu0 0.0
    %1493 = vmatpush1.msra.mxu0 0.0
    %1494 = vmatprep.subr.mxu0 0.0
    %1495 = vmatpush1.msra.mxu0 0.0
    %1496 = vmatprep.subr.mxu0 0.0
    %1497 = vmatpush1.msra.mxu0 0.0
    %1498 = vmatprep.subr.mxu0 0.0
    %1499 = vmatpush1.msra.mxu0 0.0
    %1500 = vmatprep.subr.mxu0 0.0
    %1501 = vmatpush1.msra.mxu0 0.0
    %1502 = vmatprep.subr.mxu0 0.0
    %1503 = vmatpush1.msra.mxu0 0.0
    %1504 = vmatprep.subr.mxu0 0.0
    %1505 = vmatpush1.msra.mxu0 0.0
    %1506 = vmatprep.subr.mxu0 0.0
    %1507 = vmatpush1.msra.mxu0 0.0
    %1508 = vmatprep.subr.mxu0 0.0
    %1509 = vmatpush1.msra.mxu0 0.0
    %1510 = vmatprep.subr.mxu0 0.0
    %1511 = vmatpush1.msra.mxu0 0.0
    %1512 = vmatprep.subr.mxu0 0.0
    %1513 = vmatpush1.msra.mxu0 0.0
    %1514 = vmatprep.subr.mxu0 0.0
    %1515 = vmatpush1.msra.mxu0 0.0
    %1516 = vmatprep.subr.mxu0 0.0
    %1517 = vmatpush1.msra.mxu0 0.0
    %1518 = vmatprep.subr.mxu0 0.0
    %1519 = vmatpush1.msra.mxu0 0.0
    %1520 = vmatprep.mubr.f32.mxu0 0.0
    %v1521 = vand.u32 %v1136, 4294901760
    %1522 = vmatmul.mubr.f32.gmra.mrb[0].mxu0 %v1521
    %v1523 = vpop.f32.mrb[0].mxu0
    %v1524 = vadd.f32 %v1447, %v1523
    %v1525 = vpop.f32.mrb[0].mxu0
    %1526 = vdwg.mxu0
    %1527 = vmatprep.subr.mxu0 0.0
    %v1528 = vand.u32 %v1132, 4294901760
    %1529 = vmatpush1.msra.mxu0 %v1528
    %1530 = vmatprep.subr.mxu0 0.0
    %v1531 = vand.u32 %v1139, 4294901760
    %1532 = vmatpush1.msra.mxu0 %v1531
    %1533 = vmatprep.subr.mxu0 0.0
    %1534 = vmatpush1.msra.mxu0 0.0
    %1535 = vmatprep.subr.mxu0 0.0
    %1536 = vmatpush1.msra.mxu0 0.0
    %1537 = vmatprep.subr.mxu0 0.0
    %1538 = vmatpush1.msra.mxu0 0.0
    %1539 = vmatprep.subr.mxu0 0.0
    %1540 = vmatpush1.msra.mxu0 0.0
    %1541 = vmatprep.subr.mxu0 0.0
    %1542 = vmatpush1.msra.mxu0 0.0
    %1543 = vmatprep.subr.mxu0 0.0
    %1544 = vmatpush1.msra.mxu0 0.0
    %1545 = vmatprep.subr.mxu0 0.0
    %1546 = vmatpush1.msra.mxu0 0.0
    %1547 = vmatprep.subr.mxu0 0.0
    %1548 = vmatpush1.msra.mxu0 0.0
    %1549 = vmatprep.subr.mxu0 0.0
    %1550 = vmatpush1.msra.mxu0 0.0
    %1551 = vmatprep.subr.mxu0 0.0
    %1552 = vmatpush1.msra.mxu0 0.0
    %1553 = vmatprep.subr.mxu0 0.0
    %1554 = vmatpush1.msra.mxu0 0.0
    %1555 = vmatprep.subr.mxu0 0.0
    %1556 = vmatpush1.msra.mxu0 0.0
    %1557 = vmatprep.subr.mxu0 0.0
    %1558 = vmatpush1.msra.mxu0 0.0
    %1559 = vmatprep.subr.mxu0 0.0
    %1560 = vmatpush1.msra.mxu0 0.0
    %1561 = vmatprep.subr.mxu0 0.0
    %1562 = vmatpush1.msra.mxu0 0.0
    %1563 = vmatprep.subr.mxu0 0.0
    %1564 = vmatpush1.msra.mxu0 0.0
    %1565 = vmatprep.subr.mxu0 0.0
    %1566 = vmatpush1.msra.mxu0 0.0
    %1567 = vmatprep.subr.mxu0 0.0
    %1568 = vmatpush1.msra.mxu0 0.0
    %1569 = vmatprep.subr.mxu0 0.0
    %1570 = vmatpush1.msra.mxu0 0.0
    %1571 = vmatprep.subr.mxu0 0.0
    %1572 = vmatpush1.msra.mxu0 0.0
    %1573 = vmatprep.subr.mxu0 0.0
    %1574 = vmatpush1.msra.mxu0 0.0
    %1575 = vmatprep.subr.mxu0 0.0
    %1576 = vmatpush1.msra.mxu0 0.0
    %1577 = vmatprep.subr.mxu0 0.0
    %1578 = vmatpush1.msra.mxu0 0.0
    %1579 = vmatprep.subr.mxu0 0.0
    %1580 = vmatpush1.msra.mxu0 0.0
    %1581 = vmatprep.subr.mxu0 0.0
    %1582 = vmatpush1.msra.mxu0 0.0
    %1583 = vmatprep.subr.mxu0 0.0
    %1584 = vmatpush1.msra.mxu0 0.0
    %1585 = vmatprep.subr.mxu0 0.0
    %1586 = vmatpush1.msra.mxu0 0.0
    %1587 = vmatprep.subr.mxu0 0.0
    %1588 = vmatpush1.msra.mxu0 0.0
    %1589 = vmatprep.subr.mxu0 0.0
    %1590 = vmatpush1.msra.mxu0 0.0
    %1591 = vmatprep.subr.mxu0 0.0
    %1592 = vmatpush1.msra.mxu0 0.0
    %1593 = vmatprep.mubr.f32.mxu0 0.0
    %v1594 = vand.u32 %v1136, 4294901760
    %1595 = vmatmul.mubr.f32.gmra.mrb[0].mxu0 %v1594
    %v1596 = vpop.f32.mrb[0].mxu0
    %v1597 = vadd.f32 %v1524, %v1596
    %v1598 = vpop.f32.mrb[0].mxu0
    %1599 = vdwg.mxu0
    %1600 = vst [vmem:[#allocation3] sm:$0x1] %v1597
    // Predicated region
    $region26: #{tpu_custom_call.1} parent=1 // pred_check
      _
    $region27: #{tpu_custom_call.1} parent=1 // pred_check_branch
      %1602 = sbr.rel (0) target = $region29
    $region28: #{tpu_custom_call.1} parent=1 // pred_region
      %s1604 = ssub.s32 16, 16
      %1605 = vsyncadd [#allocation4], %s1604
      %s1607 = sshll.u32 [#allocation3], 4
      %s1608 = int_to_ptr.vmem [resolvable:$true] %s1607
      %1610 = dma.vmem_to_hbm [thread:$0]  %s1608, 16, %s6, [#allocation4]
    $region29: #{tpu_custom_call.1} parent=1 // pred_fallthru
      _
    // Predicated region
    $region30: #{tpu_custom_call.1} parent=1 // pred_check
      _
    $region31: #{tpu_custom_call.1} parent=1 // pred_check_branch
      %1612 = sbr.rel (0) target = $region33
    $region32: #{tpu_custom_call.1} parent=1 // pred_region
      %1613 = dma.done [#allocation4], 16
    $region33: #{tpu_custom_call.1} parent=1 // pred_fallthru
      _
    %1614 = vsyncpa [#allocation4], 1

</llo_original>
